<compile_context>
chip_gen: v7x
topology: tpu7x:2x2x1
jax: 0.10.0
libtpu: 0.0.40
codegen_flags: <defaults>
</compile_context>

<pallas_src>
import functools

import jax
import jax.numpy as jnp
from jax.experimental import pallas as pl
from jax.experimental.pallas import tpu as pltpu

EPS = 1e-5


def make_residual_kernel(use_downsample, N, H, W, Cin, Cout, compute_dtype):
    NH = N * H
    inv_cnt = 1.0 / float(N * H * W)
    f32 = jnp.float32

    def conv3x3(a, band_ref, mtop, mbot):
        # "same" 3x3 conv in the fused (W, C) layout.  H-direction taps =
        # sublane rolls masked at image boundaries; W-direction taps + W
        # zero-padding live inside the block-banded weight matrix.
        wc = a.shape[1]
        a_up = pltpu.roll(a, shift=1, axis=0) * mtop        # row y-1, y==0 masked
        a_dn = pltpu.roll(a, shift=NH - 1, axis=0) * mbot   # row y+1, y==H-1 masked
        if wc % 128 == 0:
            # Lane-aligned: fuse all three tap rows into one K = 3*W*C matmul.
            a_cat = jnp.concatenate([a_up, a, a_dn], axis=1)
            return jnp.dot(a_cat.astype(compute_dtype), band_ref[...],
                           preferred_element_type=f32)
        # Lane-unaligned fallback (e.g. W*Cin == 64): three matmuls against
        # static row slices of the same stacked band matrix.
        taps = (a_up, a, a_dn)
        out = jnp.dot(taps[0].astype(compute_dtype), band_ref[0:wc, :],
                      preferred_element_type=f32)
        for dy in (1, 2):
            out = out + jnp.dot(taps[dy].astype(compute_dtype),
                                band_ref[dy * wc:(dy + 1) * wc, :],
                                preferred_element_type=f32)
        return out

    def bn(y, gsum_ref, gamma_ref, beta_ref):
        # One-pass training-mode BatchNorm (biased variance, eps=1e-5) folded
        # into scale/bias form.  Per-lane sum / sum-of-squares are reduced per
        # channel and re-broadcast onto the fused (W, C) lane layout with tiny
        # (1, WC) @ (WC, WC) matmuls -> no strided cross-lane reductions.
        colsum = jnp.sum(y, axis=0, keepdims=True)
        colsq = jnp.sum(y * y, axis=0, keepdims=True)
        g = gsum_ref[...]
        mean = jnp.dot(colsum, g, preferred_element_type=f32) * inv_cnt
        ex2 = jnp.dot(colsq, g, preferred_element_type=f32) * inv_cnt
        var = ex2 - mean * mean
        scale = gamma_ref[...] * jax.lax.rsqrt(var + EPS)
        bias = beta_ref[...] - mean * scale
        return y * scale + bias                             # 2 full-tile VPU ops

    def body(xf_ref, mtop_ref, mbot_ref, b1_ref, b2_ref, gsum_ref,
             g1_ref, be1_ref, g2_ref, be2_ref, bd_ref, gd_ref, bed_ref, o_ref):
        xf = xf_ref[...]                                        # (N*H, W*Cin) f32
        mtop = mtop_ref[...]                                    # (N*H, 1) masks
        mbot = mbot_ref[...]
        h = conv3x3(xf, b1_ref, mtop, mbot)                     # conv1
        h = jnp.maximum(bn(h, gsum_ref, g1_ref, be1_ref), 0.0)  # bn1 + relu
        h = conv3x3(h, b2_ref, mtop, mbot)                      # conv2
        h = bn(h, gsum_ref, g2_ref, be2_ref)                    # bn2
        if use_downsample:                                      # static Python branch
            idn = jnp.dot(xf.astype(compute_dtype), bd_ref[...],
                          preferred_element_type=f32)           # 1x1 conv
            idn = bn(idn, gsum_ref, gd_ref, bed_ref)
        else:
            idn = xf                                            # identity (Cin == Cout)
        o_ref[...] = jnp.maximum(h + idn, 0.0)                  # residual add + relu

    if use_downsample:
        def kernel(xf_ref, mtop_ref, mbot_ref, b1_ref, b2_ref, bd_ref, gsum_ref,
                   g1_ref, be1_ref, g2_ref, be2_ref, gd_ref, bed_ref, o_ref):
            body(xf_ref, mtop_ref, mbot_ref, b1_ref, b2_ref, gsum_ref,
                 g1_ref, be1_ref, g2_ref, be2_ref, bd_ref, gd_ref, bed_ref, o_ref)
    else:
        def kernel(xf_ref, mtop_ref, mbot_ref, b1_ref, b2_ref, gsum_ref,
                   g1_ref, be1_ref, g2_ref, be2_ref, o_ref):
            body(xf_ref, mtop_ref, mbot_ref, b1_ref, b2_ref, gsum_ref,
                 g1_ref, be1_ref, g2_ref, be2_ref, None, None, None, o_ref)

    return kernel


@functools.partial(jax.jit, static_argnames=("inplanes", "planes", "compute_dtype"))
def residual_block_forward(x_nchw, params, *, inplanes, planes,
                           compute_dtype=jnp.float32):
    N, C, H, W = x_nchw.shape
    assert C == inplanes
    use_ds = inplanes != planes            # identity path requires inplanes == planes
    w1, w2, wd, g1, b1, g2, b2, gd, bd = params

    NH, WCin, WCo = N * H, W * inplanes, W * planes
    f32 = jnp.float32

    # NCHW -> NHWC -> fused lane-dense (N*H, W*Cin).
    xf = jnp.transpose(x_nchw, (0, 2, 3, 1)).astype(f32).reshape(NH, WCin)

    # Image-boundary masks for the sublane-roll H taps (replace the old
    # (3, NH, NH) row-shift matrices and their matmuls).
    row = jnp.arange(NH)
    mtop = (row % H != 0).astype(f32).reshape(NH, 1)      # zeros y==0 after roll +1
    mbot = (row % H != H - 1).astype(f32).reshape(NH, 1)  # zeros y==H-1 after roll -1

    # Stacked block-banded weight matrices (W taps + W zero-padding):
    #   Band[dy*W*Ci + (x+dx-1)*Ci + ci, x*Co + co] = w[dy, dx, ci, co]
    def band3x3(w):                                       # (3, 3, ci, co) HWIO
        rows = [sum(jnp.kron(jnp.eye(W, k=1 - dx, dtype=f32), w[dy, dx])
                    for dx in range(3)) for dy in range(3)]
        return jnp.concatenate(rows, axis=0)              # (3*W*ci, W*co)

    # Static MXU operands pre-cast to compute_dtype (halves their DMA bytes on bf16).
    B1 = band3x3(w1).astype(compute_dtype)                # (3*W*Cin, W*Cout)
    B2 = band3x3(w2).astype(compute_dtype)                # (3*W*Cout, W*Cout)

    # Channel-group sum/broadcast matrix for the in-kernel BN statistic fold.
    G = jnp.kron(jnp.ones((W, W), f32), jnp.eye(planes, dtype=f32))   # (WCo, WCo)

    def tile_c(v):                        # (1, planes) -> (1, W*planes) lane layout
        return jnp.tile(v.reshape(-1), W).reshape(1, WCo)

    args = [xf, mtop, mbot, B1, B2]
    if use_ds:
        Bd = jnp.kron(jnp.eye(W, dtype=f32), wd).astype(compute_dtype)  # 1x1 conv
        args.append(Bd)
    args += [G, tile_c(g1), tile_c(b1), tile_c(g2), tile_c(b2)]
    if use_ds:
        args += [tile_c(gd), tile_c(bd)]

    kernel = make_residual_kernel(use_ds, N, H, W, inplanes, planes, compute_dtype)
    vmem = pl.BlockSpec(memory_space=pltpu.MemorySpace.VMEM)

    # Advisory cost estimate for the XLA scheduler.
    mmf = lambda m, k, n: 2 * m * k * n
    n_bn = 3 if use_ds else 2
    flops = (mmf(NH, 3 * WCin, WCo)                        # conv1
             + mmf(NH, 3 * WCo, WCo)                       # conv2
             + (mmf(NH, WCin, WCo) if use_ds else 0)       # 1x1 downsample
             + n_bn * 2 * mmf(1, WCo, WCo))                # BN stat folds
    bytes_accessed = sum(int(a.size) * a.dtype.itemsize for a in args) + NH * WCo * 4

    out = pl.pallas_call(
        kernel,
        out_shape=jax.ShapeDtypeStruct((NH, WCo), f32),    # lane-dense output
        in_specs=[vmem] * len(args),
        out_specs=vmem,
        compiler_params=pltpu.CompilerParams(vmem_limit_bytes=32 * 1024 * 1024),
        cost_estimate=pl.CostEstimate(flops=int(flops),
                                      transcendentals=int(n_bn * WCo),
                                      bytes_accessed=int(bytes_accessed)),
    )(*args)

    out = out.reshape(N, H, W, planes)
    return jnp.transpose(out, (0, 3, 1, 2))                # NHWC -> NCHW


def init_params(key, inplanes, planes):
    k = jax.random.split(key, 9)
    # conv weights stored HWIO; equivalent to PyTorch (Cout, Cin, 3, 3) transposed
    w1 = jax.random.normal(k[0], (3, 3, inplanes, planes), jnp.float32) * (9 * inplanes) ** -0.5
    w2 = jax.random.normal(k[1], (3, 3, planes, planes), jnp.float32) * (9 * planes) ** -0.5
    wd = jax.random.normal(k[2], (inplanes, planes), jnp.float32) * inplanes ** -0.5
    g1 = 1.0 + 0.1 * jax.random.normal(k[3], (1, planes), jnp.float32)
    b1 = 0.1 * jax.random.normal(k[4], (1, planes), jnp.float32)
    g2 = 1.0 + 0.1 * jax.random.normal(k[5], (1, planes), jnp.float32)
    b2 = 0.1 * jax.random.normal(k[6], (1, planes), jnp.float32)
    gd = 1.0 + 0.1 * jax.random.normal(k[7], (1, planes), jnp.float32)
    bd = 0.1 * jax.random.normal(k[8], (1, planes), jnp.float32)
    return (w1, w2, wd, g1, b1, g2, b2, gd, bd)


def reference_forward(x_nchw, params, inplanes, planes):
    # pure-JAX reference (same math, no Pallas) for a correctness check
    w1, w2, wd, g1, b1, g2, b2, gd, bd = params
    x = jnp.transpose(x_nchw, (0, 2, 3, 1)).astype(jnp.float32)

    def conv(x, w):
        return jax.lax.conv_general_dilated(
            x, w, window_strides=(1, 1), padding="SAME",
            dimension_numbers=("NHWC", "HWIO", "NHWC"),
            precision=jax.lax.Precision.HIGHEST)

    def bn(x, g, b):
        mean = jnp.mean(x, axis=(0, 1, 2), keepdims=True)
        var = jnp.mean((x - mean) ** 2, axis=(0, 1, 2), keepdims=True)
        return (x - mean) * jax.lax.rsqrt(var + EPS) * g.reshape(1, 1, 1, -1) + b.reshape(1, 1, 1, -1)

    h = jax.nn.relu(bn(conv(x, w1), g1, b1))
    h = bn(conv(h, w2), g2, b2)
    if inplanes != planes:
        idn = bn(jnp.einsum("nhwc,co->nhwo", x, wd,
                            precision=jax.lax.Precision.HIGHEST), gd, bd)
    else:
        idn = x
    out = jax.nn.relu(h + idn)
    return jnp.transpose(out, (0, 3, 1, 2))


if __name__ == "__main__":
    key = jax.random.PRNGKey(0)
    kx, kp, kx2, kp2 = jax.random.split(key, 4)

    # Case 1: inplanes != planes -> 1x1-conv/BN downsample branch exercised.
    inplanes, planes = 4, 8
    N, H, W = 2, 16, 16
    x = jax.random.normal(kx, (N, inplanes, H, W), jnp.float32)       # NCHW, like PyTorch
    params = init_params(kp, inplanes, planes)
    ref = jax.block_until_ready(reference_forward(x, params, inplanes, planes))

    out = jax.block_until_ready(
        residual_block_forward(x, params, inplanes=inplanes, planes=planes,
                               compute_dtype=jnp.float32))
    assert out.shape == (N, planes, H, W), out.shape
    err = float(jnp.max(jnp.abs(out - ref)))
    assert err < 5e-2, f"f32 path max abs error {err}"

    # bf16 MXU path (2x matmul throughput, pre-cast static operands); loose tolerance.
    out_bf16 = jax.block_until_ready(
        residual_block_forward(x, params, inplanes=inplanes, planes=planes,
                               compute_dtype=jnp.bfloat16))
    err_bf16 = float(jnp.max(jnp.abs(out_bf16 - ref)))
    assert err_bf16 < 2e-1, f"bf16 path max abs error {err_bf16}"

    # Case 2: inplanes == planes -> identity residual, downsample operands elided.
    inplanes2 = planes2 = 8
    x2 = jax.random.normal(kx2, (N, inplanes2, H, W), jnp.float32)
    params2 = init_params(kp2, inplanes2, planes2)
    out2 = jax.block_until_ready(
        residual_block_forward(x2, params2, inplanes=inplanes2, planes=planes2,
                               compute_dtype=jnp.float32))
    ref2 = jax.block_until_ready(reference_forward(x2, params2, inplanes2, planes2))
    err2 = float(jnp.max(jnp.abs(out2 - ref2)))
    assert out2.shape == (N, planes2, H, W), out2.shape
    assert err2 < 5e-2, f"identity path max abs error {err2}"

    print("KERNEL_OK")
</pallas_src>

<mosaic_0001>
module attributes {stable_mosaic.version = 11 : i64} {
  func.func @kernel(%arg0: memref<32x64xf32, #tpu.memory_space<vmem>>, %arg1: memref<32x1xf32, #tpu.memory_space<vmem>>, %arg2: memref<32x1xf32, #tpu.memory_space<vmem>>, %arg3: memref<192x128xf32, #tpu.memory_space<vmem>>, %arg4: memref<384x128xf32, #tpu.memory_space<vmem>>, %arg5: memref<64x128xf32, #tpu.memory_space<vmem>>, %arg6: memref<128x128xf32, #tpu.memory_space<vmem>>, %arg7: memref<1x128xf32, #tpu.memory_space<vmem>>, %arg8: memref<1x128xf32, #tpu.memory_space<vmem>>, %arg9: memref<1x128xf32, #tpu.memory_space<vmem>>, %arg10: memref<1x128xf32, #tpu.memory_space<vmem>>, %arg11: memref<1x128xf32, #tpu.memory_space<vmem>>, %arg12: memref<1x128xf32, #tpu.memory_space<vmem>>, %arg13: memref<32x128xf32, #tpu.memory_space<vmem>>) attributes {dimension_semantics = [], scalar_prefetch = 0 : i64, scratch_operands = 0 : i64, tpu.core_type = #tpu.core_type<tc>} {
    %c0 = arith.constant 0 : index
    %c0_0 = arith.constant 0 : index
    %0 = vector.load %arg0[%c0, %c0_0] : memref<32x64xf32, #tpu.memory_space<vmem>>, vector<32x64xf32>
    %c0_1 = arith.constant 0 : index
    %c0_2 = arith.constant 0 : index
    %1 = vector.load %arg1[%c0_1, %c0_2] : memref<32x1xf32, #tpu.memory_space<vmem>>, vector<32x1xf32>
    %c0_3 = arith.constant 0 : index
    %c0_4 = arith.constant 0 : index
    %2 = vector.load %arg2[%c0_3, %c0_4] : memref<32x1xf32, #tpu.memory_space<vmem>>, vector<32x1xf32>
    %c1_i32 = arith.constant 1 : i32
    %3 = tpu.dynamic_rotate %0 by %c1_i32 dim 0 : vector<32x64xf32>, i32 -> vector<32x64xf32>
    %4 = vector.broadcast %1 : vector<32x1xf32> to vector<32x64xf32>
    %5 = arith.mulf %3, %4 : vector<32x64xf32>
    %c31_i32 = arith.constant 31 : i32
    %6 = tpu.dynamic_rotate %0 by %c31_i32 dim 0 : vector<32x64xf32>, i32 -> vector<32x64xf32>
    %7 = vector.broadcast %2 : vector<32x1xf32> to vector<32x64xf32>
    %8 = arith.mulf %6, %7 : vector<32x64xf32>
    %c0_5 = arith.constant 0 : index
    %c0_6 = arith.constant 0 : index
    %9 = vector.load %arg3[%c0_5, %c0_6] : memref<192x128xf32, #tpu.memory_space<vmem>>, vector<64x128xf32>
    %cst = arith.constant dense<0.000000e+00> : vector<32x128xf32>
    %10 = tpu.matmul %5, %9, %cst {dimension_numbers = #tpu.dot_dimension_numbers<[1], [0], [0], [1], [0, 0, 1, 1], [], []>} : vector<32x64xf32>, vector<64x128xf32>, vector<32x128xf32> -> vector<32x128xf32>
    %c64 = arith.constant 64 : index
    %c0_7 = arith.constant 0 : index
    %11 = vector.load %arg3[%c64, %c0_7] : memref<192x128xf32, #tpu.memory_space<vmem>>, vector<64x128xf32>
    %cst_8 = arith.constant dense<0.000000e+00> : vector<32x128xf32>
    %12 = tpu.matmul %0, %11, %cst_8 {dimension_numbers = #tpu.dot_dimension_numbers<[1], [0], [0], [1], [0, 0, 1, 1], [], []>} : vector<32x64xf32>, vector<64x128xf32>, vector<32x128xf32> -> vector<32x128xf32>
    %13 = arith.addf %10, %12 : vector<32x128xf32>
    %c128 = arith.constant 128 : index
    %c0_9 = arith.constant 0 : index
    %14 = vector.load %arg3[%c128, %c0_9] : memref<192x128xf32, #tpu.memory_space<vmem>>, vector<64x128xf32>
    %cst_10 = arith.constant dense<0.000000e+00> : vector<32x128xf32>
    %15 = tpu.matmul %8, %14, %cst_10 {dimension_numbers = #tpu.dot_dimension_numbers<[1], [0], [0], [1], [0, 0, 1, 1], [], []>} : vector<32x64xf32>, vector<64x128xf32>, vector<32x128xf32> -> vector<32x128xf32>
    %16 = arith.addf %13, %15 : vector<32x128xf32>
    %cst_11 = arith.constant dense<0.000000e+00> : vector<128xf32>
    %17 = vector.multi_reduction <add>, %16, %cst_11 [0] : vector<32x128xf32> to vector<128xf32>
    %18 = vector.shape_cast %17 : vector<128xf32> to vector<1x128xf32>
    %19 = arith.mulf %16, %16 : vector<32x128xf32>
    %cst_12 = arith.constant dense<0.000000e+00> : vector<128xf32>
    %20 = vector.multi_reduction <add>, %19, %cst_12 [0] : vector<32x128xf32> to vector<128xf32>
    %21 = vector.shape_cast %20 : vector<128xf32> to vector<1x128xf32>
    %c0_13 = arith.constant 0 : index
    %c0_14 = arith.constant 0 : index
    %22 = vector.load %arg6[%c0_13, %c0_14] : memref<128x128xf32, #tpu.memory_space<vmem>>, vector<128x128xf32>
    %cst_15 = arith.constant dense<0.000000e+00> : vector<1x128xf32>
    %23 = tpu.matmul %18, %22, %cst_15 {dimension_numbers = #tpu.dot_dimension_numbers<[1], [0], [0], [1], [0, 0, 1, 1], [], []>} : vector<1x128xf32>, vector<128x128xf32>, vector<1x128xf32> -> vector<1x128xf32>
    %cst_16 = arith.constant 0.001953125 : f32
    %24 = vector.broadcast %cst_16 : f32 to vector<1x128xf32>
    %25 = arith.mulf %23, %24 : vector<1x128xf32>
    %cst_17 = arith.constant dense<0.000000e+00> : vector<1x128xf32>
    %26 = tpu.matmul %21, %22, %cst_17 {dimension_numbers = #tpu.dot_dimension_numbers<[1], [0], [0], [1], [0, 0, 1, 1], [], []>} : vector<1x128xf32>, vector<128x128xf32>, vector<1x128xf32> -> vector<1x128xf32>
    %cst_18 = arith.constant 0.001953125 : f32
    %27 = vector.broadcast %cst_18 : f32 to vector<1x128xf32>
    %28 = arith.mulf %26, %27 : vector<1x128xf32>
    %29 = arith.mulf %25, %25 : vector<1x128xf32>
    %30 = arith.subf %28, %29 : vector<1x128xf32>
    %c0_19 = arith.constant 0 : index
    %c0_20 = arith.constant 0 : index
    %31 = vector.load %arg7[%c0_19, %c0_20] : memref<1x128xf32, #tpu.memory_space<vmem>>, vector<1x128xf32>
    %cst_21 = arith.constant 9.99999974E-6 : f32
    %32 = vector.broadcast %cst_21 : f32 to vector<1x128xf32>
    %33 = arith.addf %30, %32 : vector<1x128xf32>
    %34 = math.rsqrt %33 : vector<1x128xf32>
    %35 = arith.mulf %31, %34 : vector<1x128xf32>
    %c0_22 = arith.constant 0 : index
    %c0_23 = arith.constant 0 : index
    %36 = vector.load %arg8[%c0_22, %c0_23] : memref<1x128xf32, #tpu.memory_space<vmem>>, vector<1x128xf32>
    %37 = arith.mulf %25, %35 : vector<1x128xf32>
    %38 = arith.subf %36, %37 : vector<1x128xf32>
    %39 = vector.broadcast %35 : vector<1x128xf32> to vector<32x128xf32>
    %40 = arith.mulf %16, %39 : vector<32x128xf32>
    %41 = vector.broadcast %38 : vector<1x128xf32> to vector<32x128xf32>
    %42 = arith.addf %40, %41 : vector<32x128xf32>
    %cst_24 = arith.constant 0.000000e+00 : f32
    %43 = vector.broadcast %cst_24 : f32 to vector<32x128xf32>
    %44 = arith.maximumf %42, %43 : vector<32x128xf32>
    %c1_i32_25 = arith.constant 1 : i32
    %45 = tpu.dynamic_rotate %44 by %c1_i32_25 dim 0 : vector<32x128xf32>, i32 -> vector<32x128xf32>
    %46 = vector.broadcast %1 : vector<32x1xf32> to vector<32x128xf32>
    %47 = arith.mulf %45, %46 : vector<32x128xf32>
    %c31_i32_26 = arith.constant 31 : i32
    %48 = tpu.dynamic_rotate %44 by %c31_i32_26 dim 0 : vector<32x128xf32>, i32 -> vector<32x128xf32>
    %49 = vector.broadcast %2 : vector<32x1xf32> to vector<32x128xf32>
    %50 = arith.mulf %48, %49 : vector<32x128xf32>
    %51 = tpu.concatenate %47, %44, %50 in 1 : vector<32x128xf32>, vector<32x128xf32>, vector<32x128xf32> -> vector<32x384xf32>
    %c0_27 = arith.constant 0 : index
    %c0_28 = arith.constant 0 : index
    %52 = vector.load %arg4[%c0_27, %c0_28] : memref<384x128xf32, #tpu.memory_space<vmem>>, vector<384x128xf32>
    %cst_29 = arith.constant dense<0.000000e+00> : vector<32x128xf32>
    %53 = tpu.matmul %51, %52, %cst_29 {dimension_numbers = #tpu.dot_dimension_numbers<[1], [0], [0], [1], [0, 0, 1, 1], [], []>} : vector<32x384xf32>, vector<384x128xf32>, vector<32x128xf32> -> vector<32x128xf32>
    %cst_30 = arith.constant dense<0.000000e+00> : vector<128xf32>
    %54 = vector.multi_reduction <add>, %53, %cst_30 [0] : vector<32x128xf32> to vector<128xf32>
    %55 = vector.shape_cast %54 : vector<128xf32> to vector<1x128xf32>
    %56 = arith.mulf %53, %53 : vector<32x128xf32>
    %cst_31 = arith.constant dense<0.000000e+00> : vector<128xf32>
    %57 = vector.multi_reduction <add>, %56, %cst_31 [0] : vector<32x128xf32> to vector<128xf32>
    %58 = vector.shape_cast %57 : vector<128xf32> to vector<1x128xf32>
    %c0_32 = arith.constant 0 : index
    %c0_33 = arith.constant 0 : index
    %59 = vector.load %arg6[%c0_32, %c0_33] : memref<128x128xf32, #tpu.memory_space<vmem>>, vector<128x128xf32>
    %cst_34 = arith.constant dense<0.000000e+00> : vector<1x128xf32>
    %60 = tpu.matmul %55, %59, %cst_34 {dimension_numbers = #tpu.dot_dimension_numbers<[1], [0], [0], [1], [0, 0, 1, 1], [], []>} : vector<1x128xf32>, vector<128x128xf32>, vector<1x128xf32> -> vector<1x128xf32>
    %cst_35 = arith.constant 0.001953125 : f32
    %61 = vector.broadcast %cst_35 : f32 to vector<1x128xf32>
    %62 = arith.mulf %60, %61 : vector<1x128xf32>
    %cst_36 = arith.constant dense<0.000000e+00> : vector<1x128xf32>
    %63 = tpu.matmul %58, %59, %cst_36 {dimension_numbers = #tpu.dot_dimension_numbers<[1], [0], [0], [1], [0, 0, 1, 1], [], []>} : vector<1x128xf32>, vector<128x128xf32>, vector<1x128xf32> -> vector<1x128xf32>
    %cst_37 = arith.constant 0.001953125 : f32
    %64 = vector.broadcast %cst_37 : f32 to vector<1x128xf32>
    %65 = arith.mulf %63, %64 : vector<1x128xf32>
    %66 = arith.mulf %62, %62 : vector<1x128xf32>
    %67 = arith.subf %65, %66 : vector<1x128xf32>
    %c0_38 = arith.constant 0 : index
    %c0_39 = arith.constant 0 : index
    %68 = vector.load %arg9[%c0_38, %c0_39] : memref<1x128xf32, #tpu.memory_space<vmem>>, vector<1x128xf32>
    %cst_40 = arith.constant 9.99999974E-6 : f32
    %69 = vector.broadcast %cst_40 : f32 to vector<1x128xf32>
    %70 = arith.addf %67, %69 : vector<1x128xf32>
    %71 = math.rsqrt %70 : vector<1x128xf32>
    %72 = arith.mulf %68, %71 : vector<1x128xf32>
    %c0_41 = arith.constant 0 : index
    %c0_42 = arith.constant 0 : index
    %73 = vector.load %arg10[%c0_41, %c0_42] : memref<1x128xf32, #tpu.memory_space<vmem>>, vector<1x128xf32>
    %74 = arith.mulf %62, %72 : vector<1x128xf32>
    %75 = arith.subf %73, %74 : vector<1x128xf32>
    %76 = vector.broadcast %72 : vector<1x128xf32> to vector<32x128xf32>
    %77 = arith.mulf %53, %76 : vector<32x128xf32>
    %78 = vector.broadcast %75 : vector<1x128xf32> to vector<32x128xf32>
    %79 = arith.addf %77, %78 : vector<32x128xf32>
    %c0_43 = arith.constant 0 : index
    %c0_44 = arith.constant 0 : index
    %80 = vector.load %arg5[%c0_43, %c0_44] : memref<64x128xf32, #tpu.memory_space<vmem>>, vector<64x128xf32>
    %cst_45 = arith.constant dense<0.000000e+00> : vector<32x128xf32>
    %81 = tpu.matmul %0, %80, %cst_45 {dimension_numbers = #tpu.dot_dimension_numbers<[1], [0], [0], [1], [0, 0, 1, 1], [], []>} : vector<32x64xf32>, vector<64x128xf32>, vector<32x128xf32> -> vector<32x128xf32>
    %cst_46 = arith.constant dense<0.000000e+00> : vector<128xf32>
    %82 = vector.multi_reduction <add>, %81, %cst_46 [0] : vector<32x128xf32> to vector<128xf32>
    %83 = vector.shape_cast %82 : vector<128xf32> to vector<1x128xf32>
    %84 = arith.mulf %81, %81 : vector<32x128xf32>
    %cst_47 = arith.constant dense<0.000000e+00> : vector<128xf32>
    %85 = vector.multi_reduction <add>, %84, %cst_47 [0] : vector<32x128xf32> to vector<128xf32>
    %86 = vector.shape_cast %85 : vector<128xf32> to vector<1x128xf32>
    %c0_48 = arith.constant 0 : index
    %c0_49 = arith.constant 0 : index
    %87 = vector.load %arg6[%c0_48, %c0_49] : memref<128x128xf32, #tpu.memory_space<vmem>>, vector<128x128xf32>
    %cst_50 = arith.constant dense<0.000000e+00> : vector<1x128xf32>
    %88 = tpu.matmul %83, %87, %cst_50 {dimension_numbers = #tpu.dot_dimension_numbers<[1], [0], [0], [1], [0, 0, 1, 1], [], []>} : vector<1x128xf32>, vector<128x128xf32>, vector<1x128xf32> -> vector<1x128xf32>
    %cst_51 = arith.constant 0.001953125 : f32
    %89 = vector.broadcast %cst_51 : f32 to vector<1x128xf32>
    %90 = arith.mulf %88, %89 : vector<1x128xf32>
    %cst_52 = arith.constant dense<0.000000e+00> : vector<1x128xf32>
    %91 = tpu.matmul %86, %87, %cst_52 {dimension_numbers = #tpu.dot_dimension_numbers<[1], [0], [0], [1], [0, 0, 1, 1], [], []>} : vector<1x128xf32>, vector<128x128xf32>, vector<1x128xf32> -> vector<1x128xf32>
    %cst_53 = arith.constant 0.001953125 : f32
    %92 = vector.broadcast %cst_53 : f32 to vector<1x128xf32>
    %93 = arith.mulf %91, %92 : vector<1x128xf32>
    %94 = arith.mulf %90, %90 : vector<1x128xf32>
    %95 = arith.subf %93, %94 : vector<1x128xf32>
    %c0_54 = arith.constant 0 : index
    %c0_55 = arith.constant 0 : index
    %96 = vector.load %arg11[%c0_54, %c0_55] : memref<1x128xf32, #tpu.memory_space<vmem>>, vector<1x128xf32>
    %cst_56 = arith.constant 9.99999974E-6 : f32
    %97 = vector.broadcast %cst_56 : f32 to vector<1x128xf32>
    %98 = arith.addf %95, %97 : vector<1x128xf32>
    %99 = math.rsqrt %98 : vector<1x128xf32>
    %100 = arith.mulf %96, %99 : vector<1x128xf32>
    %c0_57 = arith.constant 0 : index
    %c0_58 = arith.constant 0 : index
    %101 = vector.load %arg12[%c0_57, %c0_58] : memref<1x128xf32, #tpu.memory_space<vmem>>, vector<1x128xf32>
    %102 = arith.mulf %90, %100 : vector<1x128xf32>
    %103 = arith.subf %101, %102 : vector<1x128xf32>
    %104 = vector.broadcast %100 : vector<1x128xf32> to vector<32x128xf32>
    %105 = arith.mulf %81, %104 : vector<32x128xf32>
    %106 = vector.broadcast %103 : vector<1x128xf32> to vector<32x128xf32>
    %107 = arith.addf %105, %106 : vector<32x128xf32>
    %108 = arith.addf %79, %107 : vector<32x128xf32>
    %cst_59 = arith.constant 0.000000e+00 : f32
    %109 = vector.broadcast %cst_59 : f32 to vector<32x128xf32>
    %110 = arith.maximumf %108, %109 : vector<32x128xf32>
    %c0_60 = arith.constant 0 : index
    %c0_61 = arith.constant 0 : index
    %111 = vector.load %arg13[%c0_60, %c0_61] : memref<32x128xf32, #tpu.memory_space<vmem>>, vector<32x128xf32>
    tpu.vector_store %arg13[%c0_60, %c0_61], %110 {strides = array<i32>} : memref<32x128xf32, #tpu.memory_space<vmem>>, vector<32x128xf32>,
    return
  }
}

</mosaic_0001>

<llo_original>
// kernel: tile.26
$region0: #{tile.26}
  #allocation0 [shape = 's32[1]{0}', space=sflag, size = 0x4, scoped, tag = 'scoped memory for tile.26']
  %s0 = inlined_call_operand.vmem [shape: f32[8], index: 0, kind: input, shape index: {}]
  %s1 = inlined_call_operand.vmem [shape: f32[16,8], index: 1, kind: output, shape index: {}]
  // Predicated region
  $region2: #{tile.26} parent=0 // pred_check
    _
  $region3: #{tile.26} parent=0 // pred_check_branch
    %3 = sbr.rel (0) target = $region5
  $region4: #{tile.26} parent=0 // pred_region
    _
  $region5: #{tile.26} parent=0 // pred_fallthru
    _
  %v4 = vld [vmem:[%s0] ss:$0 sm:$0xff]
  %5 = vst [vmem:[%s1] sm:$0xff] %v4
  %s6 = scalar_lea.vmem %s1, 8
  %7 = vst [vmem:[%s6] sm:$0xff] %v4

// kernel: tile.27
$region0: #{tile.27}
  %s0 = inlined_call_operand.vmem [shape: f32[16,8], index: 0, kind: input, shape index: {}]
  %s1 = inlined_call_operand.vmem [shape: f32[1,128], index: 1, kind: output, shape index: {}]
  $region1: #{tile.27} parent=0
    #allocation0 [shape = 'u8[4096]{0}', space=vmem, size = 0x1000, scoped, tag = 'scoped mem for output reshape']
    %v2 = vld [vmem:[%s0] sm:$0x1]
    %vm3 = vcmask 64512
    %4 = vst.msk [vmem:[#allocation0] sm:$0x1] %vm3, %v2
    %s5 = scalar_lea.vmem %s0, 15
    %v6 = vld [vmem:[%s5] sm:$0x1]
    %7 = vrot.lane.b32.xlu0 %v6, 120
    %v8 = vpop.permute.xlu0 %7
    %vm9 = vcmask 1048512
    %10 = vst.msk [vmem:[#allocation0] sm:$0x1] %vm9, %v8
    %s11 = scalar_lea.vmem %s0, 14
    %v12 = vld [vmem:[%s11] sm:$0x1]
    %13 = vrot.lane.b32.xlu0 %v12, 112
    %v14 = vpop.permute.xlu0 %13
    %vm15 = vcmask 982912
    %16 = vst.msk [vmem:[#allocation0] sm:$0x1] %vm15, %v14
    %s17 = scalar_lea.vmem %s0, 13
    %v18 = vld [vmem:[%s17] sm:$0x1]
    %19 = vrot.lane.b32.xlu0 %v18, 104
    %v20 = vpop.permute.xlu0 %19
    %vm21 = vcmask 917312
    %22 = vst.msk [vmem:[#allocation0] sm:$0x1] %vm21, %v20
    %s23 = scalar_lea.vmem %s0, 12
    %v24 = vld [vmem:[%s23] sm:$0x1]
    %25 = vrot.lane.b32.xlu0 %v24, 96
    %v26 = vpop.permute.xlu0 %25
    %vm27 = vcmask 851712
    %28 = vst.msk [vmem:[#allocation0] sm:$0x1] %vm27, %v26
    %s29 = scalar_lea.vmem %s0, 11
    %v30 = vld [vmem:[%s29] sm:$0x1]
    %31 = vrot.lane.b32.xlu0 %v30, 88
    %v32 = vpop.permute.xlu0 %31
    %vm33 = vcmask 786112
    %34 = vst.msk [vmem:[#allocation0] sm:$0x1] %vm33, %v32
    %s35 = scalar_lea.vmem %s0, 10
    %v36 = vld [vmem:[%s35] sm:$0x1]
    %37 = vrot.lane.b32.xlu0 %v36, 80
    %v38 = vpop.permute.xlu0 %37
    %vm39 = vcmask 720512
    %40 = vst.msk [vmem:[#allocation0] sm:$0x1] %vm39, %v38
    %s41 = scalar_lea.vmem %s0, 9
    %v42 = vld [vmem:[%s41] sm:$0x1]
    %43 = vrot.lane.b32.xlu0 %v42, 72
    %v44 = vpop.permute.xlu0 %43
    %vm45 = vcmask 654912
    %46 = vst.msk [vmem:[#allocation0] sm:$0x1] %vm45, %v44
    %s47 = scalar_lea.vmem %s0, 8
    %v48 = vld [vmem:[%s47] sm:$0x1]
    %49 = vrot.lane.b32.xlu0 %v48, 64
    %v50 = vpop.permute.xlu0 %49
    %vm51 = vcmask 589312
    %52 = vst.msk [vmem:[#allocation0] sm:$0x1] %vm51, %v50
    %s53 = scalar_lea.vmem %s0, 7
    %v54 = vld [vmem:[%s53] sm:$0x1]
    %55 = vrot.lane.b32.xlu0 %v54, 56
    %v56 = vpop.permute.xlu0 %55
    %vm57 = vcmask 523712
    %58 = vst.msk [vmem:[#allocation0] sm:$0x1] %vm57, %v56
    %s59 = scalar_lea.vmem %s0, 6
    %v60 = vld [vmem:[%s59] sm:$0x1]
    %61 = vrot.lane.b32.xlu0 %v60, 48
    %v62 = vpop.permute.xlu0 %61
    %vm63 = vcmask 458112
    %64 = vst.msk [vmem:[#allocation0] sm:$0x1] %vm63, %v62
    %s65 = scalar_lea.vmem %s0, 5
    %v66 = vld [vmem:[%s65] sm:$0x1]
    %67 = vrot.lane.b32.xlu0 %v66, 40
    %v68 = vpop.permute.xlu0 %67
    %vm69 = vcmask 392512
    %70 = vst.msk [vmem:[#allocation0] sm:$0x1] %vm69, %v68
    %s71 = scalar_lea.vmem %s0, 4
    %v72 = vld [vmem:[%s71] sm:$0x1]
    %73 = vrot.lane.b32.xlu0 %v72, 32
    %v74 = vpop.permute.xlu0 %73
    %vm75 = vcmask 326912
    %76 = vst.msk [vmem:[#allocation0] sm:$0x1] %vm75, %v74
    %s77 = scalar_lea.vmem %s0, 3
    %v78 = vld [vmem:[%s77] sm:$0x1]
    %79 = vrot.lane.b32.xlu0 %v78, 24
    %v80 = vpop.permute.xlu0 %79
    %vm81 = vcmask 261312
    %82 = vst.msk [vmem:[#allocation0] sm:$0x1] %vm81, %v80
    %s83 = scalar_lea.vmem %s0, 2
    %v84 = vld [vmem:[%s83] sm:$0x1]
    %85 = vrot.lane.b32.xlu0 %v84, 16
    %v86 = vpop.permute.xlu0 %85
    %vm87 = vcmask 195712
    %88 = vst.msk [vmem:[#allocation0] sm:$0x1] %vm87, %v86
    %s89 = scalar_lea.vmem %s0, 1
    %v90 = vld [vmem:[%s89] sm:$0x1]
    %91 = vrot.lane.b32.xlu0 %v90, 8
    %v92 = vpop.permute.xlu0 %91
    %vm93 = vcmask 130112
    %94 = vst.msk [vmem:[#allocation0] sm:$0x1] %vm93, %v92
    %s96 = sshllo.u32 0, 1
    %v98 = vld [vmem:[#allocation0] sm:%s96]
    %s99 = sshllo.u32 0, 1
    %100 = vst [vmem:[%s1] sm:%s99] %v98

// kernel: residual_block_forward.1
$region0: #{residual_block_forward.1}
  #allocation0 [shape = 'u32[]', space=smem, size = 0x4, offset = 0x4, fixed_abs, tag = 'smem constant byte address 0x4 - core index']
  #allocation1 [shape = 'u32[144,128]{1,0:T(1,128)}', space=vmem, size = 0x12000, scoped, tag = 'internal scratch']
  %s0 = inlined_call_operand.vmem [shape: f32[32,64], index: 0, kind: input, shape index: {}]
  %s1 = inlined_call_operand.vmem [shape: f32[32,1], index: 1, kind: input, shape index: {}]
  %s2 = inlined_call_operand.vmem [shape: f32[32,1], index: 2, kind: input, shape index: {}]
  %s3 = inlined_call_operand.vmem [shape: f32[192,128], index: 3, kind: input, shape index: {}]
  %s4 = inlined_call_operand.vmem [shape: f32[384,128], index: 4, kind: input, shape index: {}]
  %s5 = inlined_call_operand.vmem [shape: f32[64,128], index: 5, kind: input, shape index: {}]
  %s6 = inlined_call_operand.vmem [shape: f32[128,128], index: 6, kind: input, shape index: {}]
  %s7 = inlined_call_operand.vmem [shape: f32[1,128], index: 7, kind: input, shape index: {}]
  %s8 = inlined_call_operand.vmem [shape: f32[1,128], index: 8, kind: input, shape index: {}]
  %s9 = inlined_call_operand.vmem [shape: f32[1,128], index: 9, kind: input, shape index: {}]
  %s10 = inlined_call_operand.vmem [shape: f32[1,128], index: 10, kind: input, shape index: {}]
  %s11 = inlined_call_operand.vmem [shape: f32[1,128], index: 11, kind: input, shape index: {}]
  %s12 = inlined_call_operand.vmem [shape: f32[1,128], index: 12, kind: input, shape index: {}]
  %s13 = inlined_call_operand.vmem [shape: f32[32,128], index: 13, kind: output, shape index: {}]
  %s14 = sld [smem:[#allocation0]]
  $region62: #{residual_block_forward.1} parent=0
    _
  %s16 = ssub.s32 1, %s14
  %s17 = scalar_select 0, %s16, %s14
  // Predicated region
  $region2: #{residual_block_forward.1} parent=0 // pred_check
    _
  $region3: #{residual_block_forward.1} parent=0 // pred_check_branch
    %19 = sbr.rel (0) target = $region5
  $region4: #{residual_block_forward.1} parent=0 // pred_region
    _
  $region5: #{residual_block_forward.1} parent=0 // pred_fallthru
    _
  // Predicated region
  $region6: #{residual_block_forward.1} parent=0 // pred_check
    _
  $region7: #{residual_block_forward.1} parent=0 // pred_check_branch
    %21 = sbr.rel (0) target = $region9
  $region8: #{residual_block_forward.1} parent=0 // pred_region
    _
  $region9: #{residual_block_forward.1} parent=0 // pred_fallthru
    _
  // Predicated region
  $region10: #{residual_block_forward.1} parent=0 // pred_check
    _
  $region11: #{residual_block_forward.1} parent=0 // pred_check_branch
    %23 = sbr.rel (0) target = $region13
  $region12: #{residual_block_forward.1} parent=0 // pred_region
    _
  $region13: #{residual_block_forward.1} parent=0 // pred_fallthru
    _
  // Predicated region
  $region14: #{residual_block_forward.1} parent=0 // pred_check
    _
  $region15: #{residual_block_forward.1} parent=0 // pred_check_branch
    %25 = sbr.rel (0) target = $region17
  $region16: #{residual_block_forward.1} parent=0 // pred_region
    _
  $region17: #{residual_block_forward.1} parent=0 // pred_fallthru
    _
  // Predicated region
  $region18: #{residual_block_forward.1} parent=0 // pred_check
    _
  $region19: #{residual_block_forward.1} parent=0 // pred_check_branch
    %27 = sbr.rel (0) target = $region21
  $region20: #{residual_block_forward.1} parent=0 // pred_region
    _
  $region21: #{residual_block_forward.1} parent=0 // pred_fallthru
    _
  // Predicated region
  $region22: #{residual_block_forward.1} parent=0 // pred_check
    _
  $region23: #{residual_block_forward.1} parent=0 // pred_check_branch
    %29 = sbr.rel (0) target = $region25
  $region24: #{residual_block_forward.1} parent=0 // pred_region
    _
  $region25: #{residual_block_forward.1} parent=0 // pred_fallthru
    _
  // Predicated region
  $region26: #{residual_block_forward.1} parent=0 // pred_check
    _
  $region27: #{residual_block_forward.1} parent=0 // pred_check_branch
    %31 = sbr.rel (0) target = $region29
  $region28: #{residual_block_forward.1} parent=0 // pred_region
    _
  $region29: #{residual_block_forward.1} parent=0 // pred_fallthru
    _
  // Predicated region
  $region30: #{residual_block_forward.1} parent=0 // pred_check
    _
  $region31: #{residual_block_forward.1} parent=0 // pred_check_branch
    %33 = sbr.rel (0) target = $region33
  $region32: #{residual_block_forward.1} parent=0 // pred_region
    _
  $region33: #{residual_block_forward.1} parent=0 // pred_fallthru
    _
  // Predicated region
  $region34: #{residual_block_forward.1} parent=0 // pred_check
    _
  $region35: #{residual_block_forward.1} parent=0 // pred_check_branch
    %35 = sbr.rel (0) target = $region37
  $region36: #{residual_block_forward.1} parent=0 // pred_region
    _
  $region37: #{residual_block_forward.1} parent=0 // pred_fallthru
    _
  // Predicated region
  $region38: #{residual_block_forward.1} parent=0 // pred_check
    _
  $region39: #{residual_block_forward.1} parent=0 // pred_check_branch
    %37 = sbr.rel (0) target = $region41
  $region40: #{residual_block_forward.1} parent=0 // pred_region
    _
  $region41: #{residual_block_forward.1} parent=0 // pred_fallthru
    _
  // Predicated region
  $region42: #{residual_block_forward.1} parent=0 // pred_check
    _
  $region43: #{residual_block_forward.1} parent=0 // pred_check_branch
    %39 = sbr.rel (0) target = $region45
  $region44: #{residual_block_forward.1} parent=0 // pred_region
    _
  $region45: #{residual_block_forward.1} parent=0 // pred_fallthru
    _
  // Predicated region
  $region46: #{residual_block_forward.1} parent=0 // pred_check
    _
  $region47: #{residual_block_forward.1} parent=0 // pred_check_branch
    %41 = sbr.rel (0) target = $region49
  $region48: #{residual_block_forward.1} parent=0 // pred_region
    _
  $region49: #{residual_block_forward.1} parent=0 // pred_fallthru
    _
  // Predicated region
  $region50: #{residual_block_forward.1} parent=0 // pred_check
    _
  $region51: #{residual_block_forward.1} parent=0 // pred_check_branch
    %43 = sbr.rel (0) target = $region53
  $region52: #{residual_block_forward.1} parent=0 // pred_region
    _
  $region53: #{residual_block_forward.1} parent=0 // pred_fallthru
    _
  %v44 = vld [vmem:[%s0] sm:$0xff]
  %v45 = vld [vmem:[%s0 + $0x8] sm:$0xff]
  %v46 = vld [vmem:[%s0 + $0x10] sm:$0xff]
  %v47 = vld [vmem:[%s0 + $0x18] sm:$0xff]
  %v48 = vld [vmem:[%s1] sm:$0xff]
  %v49 = vld [vmem:[%s1 + $0x8] sm:$0xff]
  %v50 = vld [vmem:[%s1 + $0x10] sm:$0xff]
  %v51 = vld [vmem:[%s1 + $0x18] sm:$0xff]
  %v52 = vld [vmem:[%s2] sm:$0xff]
  %v53 = vld [vmem:[%s2 + $0x8] sm:$0xff]
  %v54 = vld [vmem:[%s2 + $0x10] sm:$0xff]
  %v55 = vld [vmem:[%s2 + $0x18] sm:$0xff]
  %v56 = vrot.slane %v44, 7
  %v57 = vrot.slane %v45, 7
  %v58 = vrot.slane %v46, 7
  %v59 = vrot.slane %v47, 7
  %v60 = vlaneseq
  %v61 = vshrl.u32 %v60, 7
  %vm62 = vcmp.lt.s32.totalorder %v61, 1
  %v63 = vsel %vm62, %v58, %v59
  %v64 = vsel %vm62, %v57, %v58
  %v65 = vsel %vm62, %v56, %v57
  %v66 = vsel %vm62, %v59, %v56
  %68 = vset.pattern.permute.xlu0 0
  %69 = vperm.xlu0 %68, %v48
  %v70 = vpop.permute.xlu0 %69
  %73 = vset.pattern.permute.xlu0 0
  %74 = vperm.xlu0 %73, %v49
  %v75 = vpop.permute.xlu0 %74
  %78 = vset.pattern.permute.xlu0 0
  %79 = vperm.xlu0 %78, %v50
  %v80 = vpop.permute.xlu0 %79
  %83 = vset.pattern.permute.xlu0 0
  %84 = vperm.xlu0 %83, %v51
  %v85 = vpop.permute.xlu0 %84
  %v87 = vmul.f32 %v66, %v70
  %v88 = vmul.f32 %v65, %v75
  %v89 = vmul.f32 %v64, %v80
  %v90 = vmul.f32 %v63, %v85
  %v91 = vrot.slane %v44, 1
  %v92 = vrot.slane %v45, 1
  %v93 = vrot.slane %v46, 1
  %v94 = vrot.slane %v47, 1
  %vm95 = vcmp.lt.s32.totalorder %v61, 7
  %v96 = vsel %vm95, %v93, %v94
  %v97 = vsel %vm95, %v92, %v93
  %v98 = vsel %vm95, %v91, %v92
  %v99 = vsel %vm95, %v94, %v91
  %101 = vset.pattern.permute.xlu0 0
  %102 = vperm.xlu0 %101, %v52
  %v103 = vpop.permute.xlu0 %102
  %106 = vset.pattern.permute.xlu0 0
  %107 = vperm.xlu0 %106, %v53
  %v108 = vpop.permute.xlu0 %107
  %111 = vset.pattern.permute.xlu0 0
  %112 = vperm.xlu0 %111, %v54
  %v113 = vpop.permute.xlu0 %112
  %116 = vset.pattern.permute.xlu0 0
  %117 = vperm.xlu0 %116, %v55
  %v118 = vpop.permute.xlu0 %117
  %v120 = vmul.f32 %v98, %v103
  %v121 = vmul.f32 %v97, %v108
  %v122 = vmul.f32 %v96, %v113
  %v123 = vmul.f32 %v99, %v118
  %v124 = vld [vmem:[%s3] sm:$0xff]
  %v125 = vld [vmem:[%s3 + $0x8] sm:$0xff]
  %v126 = vld [vmem:[%s3 + $0x10] sm:$0xff]
  %v127 = vld [vmem:[%s3 + $0x18] sm:$0xff]
  %v128 = vld [vmem:[%s3 + $0x20] sm:$0xff]
  %v129 = vld [vmem:[%s3 + $0x28] sm:$0xff]
  %v130 = vld [vmem:[%s3 + $0x30] sm:$0xff]
  %v131 = vld [vmem:[%s3 + $0x38] sm:$0xff]
  %v132 = vld [vmem:[%s3 + $0x40] sm:$0xff]
  %v133 = vld [vmem:[%s3 + $0x48] sm:$0xff]
  %v134 = vld [vmem:[%s3 + $0x50] sm:$0xff]
  %v135 = vld [vmem:[%s3 + $0x58] sm:$0xff]
  %v136 = vld [vmem:[%s3 + $0x60] sm:$0xff]
  %v137 = vld [vmem:[%s3 + $0x68] sm:$0xff]
  %v138 = vld [vmem:[%s3 + $0x70] sm:$0xff]
  %v139 = vld [vmem:[%s3 + $0x78] sm:$0xff]
  %vm140 = vcmask 523264
  %v142 = vsel %vm140, %v44, 0
  %v145 = vsel %vm140, %v45, 0
  %v148 = vsel %vm140, %v46, 0
  %v151 = vsel %vm140, %v47, 0
  %153 = vmatprep.subr.mxu0 0.0
  %154 = vmatpush1.msra.mxu0 %v132
  %155 = vmatprep.subr.mxu0 0.0
  %156 = vmatpush1.msra.mxu0 %v133
  %157 = vmatprep.subr.mxu0 0.0
  %158 = vmatpush1.msra.mxu0 %v134
  %159 = vmatprep.subr.mxu0 0.0
  %160 = vmatpush1.msra.mxu0 %v135
  %161 = vmatprep.subr.mxu0 0.0
  %162 = vmatpush1.msra.mxu0 %v136
  %163 = vmatprep.subr.mxu0 0.0
  %164 = vmatpush1.msra.mxu0 %v137
  %165 = vmatprep.subr.mxu0 0.0
  %166 = vmatpush1.msra.mxu0 %v138
  %167 = vmatprep.subr.mxu0 0.0
  %168 = vmatpush1.msra.mxu0 %v139
  %169 = vmatprep.subr.mxu0 0.0
  %170 = vmatpush1.msra.mxu0 0.0
  %171 = vmatprep.subr.mxu0 0.0
  %172 = vmatpush1.msra.mxu0 0.0
  %173 = vmatprep.subr.mxu0 0.0
  %174 = vmatpush1.msra.mxu0 0.0
  %175 = vmatprep.subr.mxu0 0.0
  %176 = vmatpush1.msra.mxu0 0.0
  %177 = vmatprep.subr.mxu0 0.0
  %178 = vmatpush1.msra.mxu0 0.0
  %179 = vmatprep.subr.mxu0 0.0
  %180 = vmatpush1.msra.mxu0 0.0
  %181 = vmatprep.subr.mxu0 0.0
  %182 = vmatpush1.msra.mxu0 0.0
  %183 = vmatprep.subr.mxu0 0.0
  %184 = vmatpush1.msra.mxu0 0.0
  %185 = vmatprep.subr.mxu0 0.0
  %186 = vmatpush1.msra.mxu0 0.0
  %187 = vmatprep.subr.mxu0 0.0
  %188 = vmatpush1.msra.mxu0 0.0
  %189 = vmatprep.subr.mxu0 0.0
  %190 = vmatpush1.msra.mxu0 0.0
  %191 = vmatprep.subr.mxu0 0.0
  %192 = vmatpush1.msra.mxu0 0.0
  %193 = vmatprep.subr.mxu0 0.0
  %194 = vmatpush1.msra.mxu0 0.0
  %195 = vmatprep.subr.mxu0 0.0
  %196 = vmatpush1.msra.mxu0 0.0
  %197 = vmatprep.subr.mxu0 0.0
  %198 = vmatpush1.msra.mxu0 0.0
  %199 = vmatprep.subr.mxu0 0.0
  %200 = vmatpush1.msra.mxu0 0.0
  %201 = vmatprep.subr.mxu0 0.0
  %202 = vmatpush1.msra.mxu0 0.0
  %203 = vmatprep.subr.mxu0 0.0
  %204 = vmatpush1.msra.mxu0 0.0
  %205 = vmatprep.subr.mxu0 0.0
  %206 = vmatpush1.msra.mxu0 0.0
  %207 = vmatprep.subr.mxu0 0.0
  %208 = vmatpush1.msra.mxu0 0.0
  %209 = vmatprep.subr.mxu0 0.0
  %210 = vmatpush1.msra.mxu0 0.0
  %211 = vmatprep.subr.mxu0 0.0
  %212 = vmatpush1.msra.mxu0 0.0
  %213 = vmatprep.subr.mxu0 0.0
  %214 = vmatpush1.msra.mxu0 0.0
  %215 = vmatprep.subr.mxu0 0.0
  %216 = vmatpush1.msra.mxu0 0.0
  %217 = vmatprep.mubr.f32.mxu0 0.0
  %218 = vmatmul.mubr.f32.gmra.mrb[0].mxu0 %v142
  %v219 = vpop.f32.mrb[0].mxu0
  %v220 = vadd.f32 0.0, %v219
  %v221 = vpop.f32.mrb[0].mxu0
  %222 = vmatprep.mubr.f32.mxu0 0.0
  %223 = vmatmul.mubr.f32.gmra.mrb[0].mxu0 %v145
  %v224 = vpop.f32.mrb[0].mxu0
  %v225 = vadd.f32 0.0, %v224
  %v226 = vpop.f32.mrb[0].mxu0
  %227 = vmatprep.mubr.f32.mxu0 0.0
  %228 = vmatmul.mubr.f32.gmra.mrb[0].mxu0 %v148
  %v229 = vpop.f32.mrb[0].mxu0
  %v230 = vadd.f32 0.0, %v229
  %v231 = vpop.f32.mrb[0].mxu0
  %232 = vmatprep.mubr.f32.mxu0 0.0
  %233 = vmatmul.mubr.f32.gmra.mrb[0].mxu0 %v151
  %v234 = vpop.f32.mrb[0].mxu0
  %v235 = vadd.f32 0.0, %v234
  %v236 = vpop.f32.mrb[0].mxu0
  %237 = vdwg.mxu0
  %v239 = vsel %vm140, %v87, 0
  %v242 = vsel %vm140, %v88, 0
  %v245 = vsel %vm140, %v89, 0
  %v248 = vsel %vm140, %v90, 0
  %250 = vmatprep.subr.mxu0 0.0
  %251 = vmatpush1.msra.mxu0 %v124
  %252 = vmatprep.subr.mxu0 0.0
  %253 = vmatpush1.msra.mxu0 %v125
  %254 = vmatprep.subr.mxu0 0.0
  %255 = vmatpush1.msra.mxu0 %v126
  %256 = vmatprep.subr.mxu0 0.0
  %257 = vmatpush1.msra.mxu0 %v127
  %258 = vmatprep.subr.mxu0 0.0
  %259 = vmatpush1.msra.mxu0 %v128
  %260 = vmatprep.subr.mxu0 0.0
  %261 = vmatpush1.msra.mxu0 %v129
  %262 = vmatprep.subr.mxu0 0.0
  %263 = vmatpush1.msra.mxu0 %v130
  %264 = vmatprep.subr.mxu0 0.0
  %265 = vmatpush1.msra.mxu0 %v131
  %266 = vmatprep.subr.mxu0 0.0
  %267 = vmatpush1.msra.mxu0 0.0
  %268 = vmatprep.subr.mxu0 0.0
  %269 = vmatpush1.msra.mxu0 0.0
  %270 = vmatprep.subr.mxu0 0.0
  %271 = vmatpush1.msra.mxu0 0.0
  %272 = vmatprep.subr.mxu0 0.0
  %273 = vmatpush1.msra.mxu0 0.0
  %274 = vmatprep.subr.mxu0 0.0
  %275 = vmatpush1.msra.mxu0 0.0
  %276 = vmatprep.subr.mxu0 0.0
  %277 = vmatpush1.msra.mxu0 0.0
  %278 = vmatprep.subr.mxu0 0.0
  %279 = vmatpush1.msra.mxu0 0.0
  %280 = vmatprep.subr.mxu0 0.0
  %281 = vmatpush1.msra.mxu0 0.0
  %282 = vmatprep.subr.mxu0 0.0
  %283 = vmatpush1.msra.mxu0 0.0
  %284 = vmatprep.subr.mxu0 0.0
  %285 = vmatpush1.msra.mxu0 0.0
  %286 = vmatprep.subr.mxu0 0.0
  %287 = vmatpush1.msra.mxu0 0.0
  %288 = vmatprep.subr.mxu0 0.0
  %289 = vmatpush1.msra.mxu0 0.0
  %290 = vmatprep.subr.mxu0 0.0
  %291 = vmatpush1.msra.mxu0 0.0
  %292 = vmatprep.subr.mxu0 0.0
  %293 = vmatpush1.msra.mxu0 0.0
  %294 = vmatprep.subr.mxu0 0.0
  %295 = vmatpush1.msra.mxu0 0.0
  %296 = vmatprep.subr.mxu0 0.0
  %297 = vmatpush1.msra.mxu0 0.0
  %298 = vmatprep.subr.mxu0 0.0
  %299 = vmatpush1.msra.mxu0 0.0
  %300 = vmatprep.subr.mxu0 0.0
  %301 = vmatpush1.msra.mxu0 0.0
  %302 = vmatprep.subr.mxu0 0.0
  %303 = vmatpush1.msra.mxu0 0.0
  %304 = vmatprep.subr.mxu0 0.0
  %305 = vmatpush1.msra.mxu0 0.0
  %306 = vmatprep.subr.mxu0 0.0
  %307 = vmatpush1.msra.mxu0 0.0
  %308 = vmatprep.subr.mxu0 0.0
  %309 = vmatpush1.msra.mxu0 0.0
  %310 = vmatprep.subr.mxu0 0.0
  %311 = vmatpush1.msra.mxu0 0.0
  %312 = vmatprep.subr.mxu0 0.0
  %313 = vmatpush1.msra.mxu0 0.0
  %314 = vmatprep.mubr.f32.mxu0 0.0
  %315 = vmatmul.mubr.f32.gmra.mrb[0].mxu0 %v239
  %v316 = vpop.f32.mrb[0].mxu0
  %v317 = vadd.f32 %v220, %v316
  %v318 = vpop.f32.mrb[0].mxu0
  %319 = vmatprep.mubr.f32.mxu0 0.0
  %320 = vmatmul.mubr.f32.gmra.mrb[0].mxu0 %v242
  %v321 = vpop.f32.mrb[0].mxu0
  %v322 = vadd.f32 %v225, %v321
  %v323 = vpop.f32.mrb[0].mxu0
  %324 = vmatprep.mubr.f32.mxu0 0.0
  %325 = vmatmul.mubr.f32.gmra.mrb[0].mxu0 %v245
  %v326 = vpop.f32.mrb[0].mxu0
  %v327 = vadd.f32 %v230, %v326
  %v328 = vpop.f32.mrb[0].mxu0
  %329 = vmatprep.mubr.f32.mxu0 0.0
  %330 = vmatmul.mubr.f32.gmra.mrb[0].mxu0 %v248
  %v331 = vpop.f32.mrb[0].mxu0
  %v332 = vadd.f32 %v235, %v331
  %v333 = vpop.f32.mrb[0].mxu0
  %334 = vdwg.mxu0
  %v335 = vld [vmem:[%s3 + $0x80] sm:$0xff]
  %v336 = vld [vmem:[%s3 + $0x88] sm:$0xff]
  %v337 = vld [vmem:[%s3 + $0x90] sm:$0xff]
  %v338 = vld [vmem:[%s3 + $0x98] sm:$0xff]
  %v339 = vld [vmem:[%s3 + $0xa0] sm:$0xff]
  %v340 = vld [vmem:[%s3 + $0xa8] sm:$0xff]
  %v341 = vld [vmem:[%s3 + $0xb0] sm:$0xff]
  %v342 = vld [vmem:[%s3 + $0xb8] sm:$0xff]
  %v344 = vsel %vm140, %v120, 0
  %v347 = vsel %vm140, %v121, 0
  %v350 = vsel %vm140, %v122, 0
  %v353 = vsel %vm140, %v123, 0
  %355 = vmatprep.subr.mxu0 0.0
  %356 = vmatpush1.msra.mxu0 %v335
  %357 = vmatprep.subr.mxu0 0.0
  %358 = vmatpush1.msra.mxu0 %v336
  %359 = vmatprep.subr.mxu0 0.0
  %360 = vmatpush1.msra.mxu0 %v337
  %361 = vmatprep.subr.mxu0 0.0
  %362 = vmatpush1.msra.mxu0 %v338
  %363 = vmatprep.subr.mxu0 0.0
  %364 = vmatpush1.msra.mxu0 %v339
  %365 = vmatprep.subr.mxu0 0.0
  %366 = vmatpush1.msra.mxu0 %v340
  %367 = vmatprep.subr.mxu0 0.0
  %368 = vmatpush1.msra.mxu0 %v341
  %369 = vmatprep.subr.mxu0 0.0
  %370 = vmatpush1.msra.mxu0 %v342
  %371 = vmatprep.subr.mxu0 0.0
  %372 = vmatpush1.msra.mxu0 0.0
  %373 = vmatprep.subr.mxu0 0.0
  %374 = vmatpush1.msra.mxu0 0.0
  %375 = vmatprep.subr.mxu0 0.0
  %376 = vmatpush1.msra.mxu0 0.0
  %377 = vmatprep.subr.mxu0 0.0
  %378 = vmatpush1.msra.mxu0 0.0
  %379 = vmatprep.subr.mxu0 0.0
  %380 = vmatpush1.msra.mxu0 0.0
  %381 = vmatprep.subr.mxu0 0.0
  %382 = vmatpush1.msra.mxu0 0.0
  %383 = vmatprep.subr.mxu0 0.0
  %384 = vmatpush1.msra.mxu0 0.0
  %385 = vmatprep.subr.mxu0 0.0
  %386 = vmatpush1.msra.mxu0 0.0
  %387 = vmatprep.subr.mxu0 0.0
  %388 = vmatpush1.msra.mxu0 0.0
  %389 = vmatprep.subr.mxu0 0.0
  %390 = vmatpush1.msra.mxu0 0.0
  %391 = vmatprep.subr.mxu0 0.0
  %392 = vmatpush1.msra.mxu0 0.0
  %393 = vmatprep.subr.mxu0 0.0
  %394 = vmatpush1.msra.mxu0 0.0
  %395 = vmatprep.subr.mxu0 0.0
  %396 = vmatpush1.msra.mxu0 0.0
  %397 = vmatprep.subr.mxu0 0.0
  %398 = vmatpush1.msra.mxu0 0.0
  %399 = vmatprep.subr.mxu0 0.0
  %400 = vmatpush1.msra.mxu0 0.0
  %401 = vmatprep.subr.mxu0 0.0
  %402 = vmatpush1.msra.mxu0 0.0
  %403 = vmatprep.subr.mxu0 0.0
  %404 = vmatpush1.msra.mxu0 0.0
  %405 = vmatprep.subr.mxu0 0.0
  %406 = vmatpush1.msra.mxu0 0.0
  %407 = vmatprep.subr.mxu0 0.0
  %408 = vmatpush1.msra.mxu0 0.0
  %409 = vmatprep.subr.mxu0 0.0
  %410 = vmatpush1.msra.mxu0 0.0
  %411 = vmatprep.subr.mxu0 0.0
  %412 = vmatpush1.msra.mxu0 0.0
  %413 = vmatprep.subr.mxu0 0.0
  %414 = vmatpush1.msra.mxu0 0.0
  %415 = vmatprep.subr.mxu0 0.0
  %416 = vmatpush1.msra.mxu0 0.0
  %417 = vmatprep.subr.mxu0 0.0
  %418 = vmatpush1.msra.mxu0 0.0
  %419 = vmatprep.mubr.f32.mxu0 0.0
  %420 = vmatmul.mubr.f32.gmra.mrb[0].mxu0 %v344
  %v421 = vpop.f32.mrb[0].mxu0
  %v422 = vadd.f32 0.0, %v421
  %v423 = vpop.f32.mrb[0].mxu0
  %424 = vmatprep.mubr.f32.mxu0 0.0
  %425 = vmatmul.mubr.f32.gmra.mrb[0].mxu0 %v347
  %v426 = vpop.f32.mrb[0].mxu0
  %v427 = vadd.f32 0.0, %v426
  %v428 = vpop.f32.mrb[0].mxu0
  %429 = vmatprep.mubr.f32.mxu0 0.0
  %430 = vmatmul.mubr.f32.gmra.mrb[0].mxu0 %v350
  %v431 = vpop.f32.mrb[0].mxu0
  %v432 = vadd.f32 0.0, %v431
  %v433 = vpop.f32.mrb[0].mxu0
  %434 = vmatprep.mubr.f32.mxu0 0.0
  %435 = vmatmul.mubr.f32.gmra.mrb[0].mxu0 %v353
  %v436 = vpop.f32.mrb[0].mxu0
  %v437 = vadd.f32 0.0, %v436
  %v438 = vpop.f32.mrb[0].mxu0
  %439 = vdwg.mxu0
  %v440 = vadd.f32 %v317, %v422
  %v441 = vadd.f32 %v322, %v427
  %v442 = vadd.f32 %v327, %v432
  %v443 = vadd.f32 %v332, %v437
  %v444 = vadd.f32 %v440, %v441
  %v445 = vadd.f32 %v444, %v442
  %v446 = vadd.f32 %v445, %v443
  %v447 = vrot.slane %v446, 4
  %v448 = vadd.f32 %v446, %v447
  %v449 = vrot.slane %v448, 2
  %v450 = vadd.f32 %v448, %v449
  %v451 = vrot.slane %v450, 1
  %v452 = vadd.f32 %v450, %v451
  %v453 = vmul.f32 %v440, %v440
  %v454 = vmul.f32 %v441, %v441
  %v455 = vmul.f32 %v442, %v442
  %v456 = vmul.f32 %v443, %v443
  %v457 = vadd.f32 %v453, %v454
  %v458 = vadd.f32 %v457, %v455
  %v459 = vadd.f32 %v458, %v456
  %v460 = vrot.slane %v459, 4
  %v461 = vadd.f32 %v459, %v460
  %v462 = vrot.slane %v461, 2
  %v463 = vadd.f32 %v461, %v462
  %v464 = vrot.slane %v463, 1
  %v465 = vadd.f32 %v463, %v464
  %v466 = vld [vmem:[%s6] sm:$0xff]
  %v467 = vld [vmem:[%s6 + $0x8] sm:$0xff]
  %v468 = vld [vmem:[%s6 + $0x10] sm:$0xff]
  %v469 = vld [vmem:[%s6 + $0x18] sm:$0xff]
  %v470 = vld [vmem:[%s6 + $0x20] sm:$0xff]
  %v471 = vld [vmem:[%s6 + $0x28] sm:$0xff]
  %v472 = vld [vmem:[%s6 + $0x30] sm:$0xff]
  %v473 = vld [vmem:[%s6 + $0x38] sm:$0xff]
  %v474 = vld [vmem:[%s6 + $0x40] sm:$0xff]
  %v475 = vld [vmem:[%s6 + $0x48] sm:$0xff]
  %v476 = vld [vmem:[%s6 + $0x50] sm:$0xff]
  %v477 = vld [vmem:[%s6 + $0x58] sm:$0xff]
  %v478 = vld [vmem:[%s6 + $0x60] sm:$0xff]
  %v479 = vld [vmem:[%s6 + $0x68] sm:$0xff]
  %v480 = vld [vmem:[%s6 + $0x70] sm:$0xff]
  %v481 = vld [vmem:[%s6 + $0x78] sm:$0xff]
  %482 = vmatprep.subr.mxu0 0.0
  %483 = vmatpush1.msra.mxu0 %v466
  %484 = vmatprep.subr.mxu0 0.0
  %485 = vmatpush1.msra.mxu0 %v467
  %486 = vmatprep.subr.mxu0 0.0
  %487 = vmatpush1.msra.mxu0 %v468
  %488 = vmatprep.subr.mxu0 0.0
  %489 = vmatpush1.msra.mxu0 %v469
  %490 = vmatprep.subr.mxu0 0.0
  %491 = vmatpush1.msra.mxu0 %v470
  %492 = vmatprep.subr.mxu0 0.0
  %493 = vmatpush1.msra.mxu0 %v471
  %494 = vmatprep.subr.mxu0 0.0
  %495 = vmatpush1.msra.mxu0 %v472
  %496 = vmatprep.subr.mxu0 0.0
  %497 = vmatpush1.msra.mxu0 %v473
  %498 = vmatprep.subr.mxu0 0.0
  %499 = vmatpush1.msra.mxu0 %v474
  %500 = vmatprep.subr.mxu0 0.0
  %501 = vmatpush1.msra.mxu0 %v475
  %502 = vmatprep.subr.mxu0 0.0
  %503 = vmatpush1.msra.mxu0 %v476
  %504 = vmatprep.subr.mxu0 0.0
  %505 = vmatpush1.msra.mxu0 %v477
  %506 = vmatprep.subr.mxu0 0.0
  %507 = vmatpush1.msra.mxu0 %v478
  %508 = vmatprep.subr.mxu0 0.0
  %509 = vmatpush1.msra.mxu0 %v479
  %510 = vmatprep.subr.mxu0 0.0
  %511 = vmatpush1.msra.mxu0 %v480
  %512 = vmatprep.subr.mxu0 0.0
  %513 = vmatpush1.msra.mxu0 %v481
  %514 = vmatprep.subr.mxu0 0.0
  %515 = vmatpush1.msra.mxu0 0.0
  %516 = vmatprep.subr.mxu0 0.0
  %517 = vmatpush1.msra.mxu0 0.0
  %518 = vmatprep.subr.mxu0 0.0
  %519 = vmatpush1.msra.mxu0 0.0
  %520 = vmatprep.subr.mxu0 0.0
  %521 = vmatpush1.msra.mxu0 0.0
  %522 = vmatprep.subr.mxu0 0.0
  %523 = vmatpush1.msra.mxu0 0.0
  %524 = vmatprep.subr.mxu0 0.0
  %525 = vmatpush1.msra.mxu0 0.0
  %526 = vmatprep.subr.mxu0 0.0
  %527 = vmatpush1.msra.mxu0 0.0
  %528 = vmatprep.subr.mxu0 0.0
  %529 = vmatpush1.msra.mxu0 0.0
  %530 = vmatprep.subr.mxu0 0.0
  %531 = vmatpush1.msra.mxu0 0.0
  %532 = vmatprep.subr.mxu0 0.0
  %533 = vmatpush1.msra.mxu0 0.0
  %534 = vmatprep.subr.mxu0 0.0
  %535 = vmatpush1.msra.mxu0 0.0
  %536 = vmatprep.subr.mxu0 0.0
  %537 = vmatpush1.msra.mxu0 0.0
  %538 = vmatprep.subr.mxu0 0.0
  %539 = vmatpush1.msra.mxu0 0.0
  %540 = vmatprep.subr.mxu0 0.0
  %541 = vmatpush1.msra.mxu0 0.0
  %542 = vmatprep.subr.mxu0 0.0
  %543 = vmatpush1.msra.mxu0 0.0
  %544 = vmatprep.subr.mxu0 0.0
  %545 = vmatpush1.msra.mxu0 0.0
  %546 = vmatprep.mubr.f32.mxu0 0.0
  %547 = vmatmul.mubr.f32.gmra.mrb[0].mxu0 %v452
  %v548 = vpop.f32.mrb[0].mxu0
  %v549 = vadd.f32 0.0, %v548
  %v550 = vpop.f32.mrb[0].mxu0
  %551 = vdwg.mxu0
  %v552 = vmul.f32 %v549, 0.001953125
  %553 = vmatprep.subr.mxu0 0.0
  %554 = vmatpush1.msra.mxu0 %v466
  %555 = vmatprep.subr.mxu0 0.0
  %556 = vmatpush1.msra.mxu0 %v467
  %557 = vmatprep.subr.mxu0 0.0
  %558 = vmatpush1.msra.mxu0 %v468
  %559 = vmatprep.subr.mxu0 0.0
  %560 = vmatpush1.msra.mxu0 %v469
  %561 = vmatprep.subr.mxu0 0.0
  %562 = vmatpush1.msra.mxu0 %v470
  %563 = vmatprep.subr.mxu0 0.0
  %564 = vmatpush1.msra.mxu0 %v471
  %565 = vmatprep.subr.mxu0 0.0
  %566 = vmatpush1.msra.mxu0 %v472
  %567 = vmatprep.subr.mxu0 0.0
  %568 = vmatpush1.msra.mxu0 %v473
  %569 = vmatprep.subr.mxu0 0.0
  %570 = vmatpush1.msra.mxu0 %v474
  %571 = vmatprep.subr.mxu0 0.0
  %572 = vmatpush1.msra.mxu0 %v475
  %573 = vmatprep.subr.mxu0 0.0
  %574 = vmatpush1.msra.mxu0 %v476
  %575 = vmatprep.subr.mxu0 0.0
  %576 = vmatpush1.msra.mxu0 %v477
  %577 = vmatprep.subr.mxu0 0.0
  %578 = vmatpush1.msra.mxu0 %v478
  %579 = vmatprep.subr.mxu0 0.0
  %580 = vmatpush1.msra.mxu0 %v479
  %581 = vmatprep.subr.mxu0 0.0
  %582 = vmatpush1.msra.mxu0 %v480
  %583 = vmatprep.subr.mxu0 0.0
  %584 = vmatpush1.msra.mxu0 %v481
  %585 = vmatprep.subr.mxu0 0.0
  %586 = vmatpush1.msra.mxu0 0.0
  %587 = vmatprep.subr.mxu0 0.0
  %588 = vmatpush1.msra.mxu0 0.0
  %589 = vmatprep.subr.mxu0 0.0
  %590 = vmatpush1.msra.mxu0 0.0
  %591 = vmatprep.subr.mxu0 0.0
  %592 = vmatpush1.msra.mxu0 0.0
  %593 = vmatprep.subr.mxu0 0.0
  %594 = vmatpush1.msra.mxu0 0.0
  %595 = vmatprep.subr.mxu0 0.0
  %596 = vmatpush1.msra.mxu0 0.0
  %597 = vmatprep.subr.mxu0 0.0
  %598 = vmatpush1.msra.mxu0 0.0
  %599 = vmatprep.subr.mxu0 0.0
  %600 = vmatpush1.msra.mxu0 0.0
  %601 = vmatprep.subr.mxu0 0.0
  %602 = vmatpush1.msra.mxu0 0.0
  %603 = vmatprep.subr.mxu0 0.0
  %604 = vmatpush1.msra.mxu0 0.0
  %605 = vmatprep.subr.mxu0 0.0
  %606 = vmatpush1.msra.mxu0 0.0
  %607 = vmatprep.subr.mxu0 0.0
  %608 = vmatpush1.msra.mxu0 0.0
  %609 = vmatprep.subr.mxu0 0.0
  %610 = vmatpush1.msra.mxu0 0.0
  %611 = vmatprep.subr.mxu0 0.0
  %612 = vmatpush1.msra.mxu0 0.0
  %613 = vmatprep.subr.mxu0 0.0
  %614 = vmatpush1.msra.mxu0 0.0
  %615 = vmatprep.subr.mxu0 0.0
  %616 = vmatpush1.msra.mxu0 0.0
  %617 = vmatprep.mubr.f32.mxu0 0.0
  %618 = vmatmul.mubr.f32.gmra.mrb[0].mxu0 %v465
  %v619 = vpop.f32.mrb[0].mxu0
  %v620 = vadd.f32 0.0, %v619
  %v621 = vpop.f32.mrb[0].mxu0
  %622 = vdwg.mxu0
  %v623 = vmul.f32 %v620, 0.001953125
  %v624 = vmul.f32 %v552, %v552
  %v625 = vsub.f32 %v623, %v624
  %v626 = vld [vmem:[%s7] sm:$0x1]
  %v627 = vadd.f32 %v625, 1e-05
  %v628 = vrsqrt.pop %v627
  %v629 = vmul.f32 %v626, %v628
  %v630 = vld [vmem:[%s8] sm:$0x1]
  %v631 = vmul.f32 %v552, %v629
  %v632 = vsub.f32 %v630, %v631
  %v634 = vlaneseq
  %v635 = vshrl.u32 %v634, 7
  %v636 = vsub.s32 0, %v635
  %v637 = vrot.slane %v629, %v636
  %v639 = vmul.f32 %v440, %v637
  %v640 = vmul.f32 %v441, %v637
  %v641 = vmul.f32 %v442, %v637
  %v642 = vmul.f32 %v443, %v637
  %v644 = vlaneseq
  %v645 = vshrl.u32 %v644, 7
  %v646 = vsub.s32 0, %v645
  %v647 = vrot.slane %v632, %v646
  %v649 = vadd.f32 %v639, %v647
  %v650 = vadd.f32 %v640, %v647
  %v651 = vadd.f32 %v641, %v647
  %v652 = vadd.f32 %v642, %v647
  %v653 = vmax.f32 %v649, 0.0
  %v654 = vmax.f32 %v650, 0.0
  %v655 = vmax.f32 %v651, 0.0
  %v656 = vmax.f32 %v652, 0.0
  %v657 = vrot.slane %v653, 7
  %v658 = vrot.slane %v654, 7
  %v659 = vrot.slane %v655, 7
  %v660 = vrot.slane %v656, 7
  %v661 = vsel %vm62, %v659, %v660
  %v662 = vsel %vm62, %v658, %v659
  %v663 = vsel %vm62, %v657, %v658
  %v664 = vsel %vm62, %v660, %v657
  %v665 = vmul.f32 %v664, %v70
  %v666 = vmul.f32 %v663, %v75
  %v667 = vmul.f32 %v662, %v80
  %v668 = vmul.f32 %v661, %v85
  %v669 = vrot.slane %v653, 1
  %v670 = vrot.slane %v654, 1
  %v671 = vrot.slane %v655, 1
  %v672 = vrot.slane %v656, 1
  %v673 = vsel %vm95, %v671, %v672
  %v674 = vsel %vm95, %v670, %v671
  %v675 = vsel %vm95, %v669, %v670
  %v676 = vsel %vm95, %v672, %v669
  %v677 = vmul.f32 %v675, %v103
  %v678 = vmul.f32 %v674, %v108
  %v679 = vmul.f32 %v673, %v113
  %v680 = vmul.f32 %v676, %v118
  %v681 = vld [vmem:[%s4] sm:$0xff]
  %v682 = vld [vmem:[%s4 + $0x8] sm:$0xff]
  %v683 = vld [vmem:[%s4 + $0x10] sm:$0xff]
  %v684 = vld [vmem:[%s4 + $0x18] sm:$0xff]
  %v685 = vld [vmem:[%s4 + $0x20] sm:$0xff]
  %v686 = vld [vmem:[%s4 + $0x28] sm:$0xff]
  %v687 = vld [vmem:[%s4 + $0x30] sm:$0xff]
  %v688 = vld [vmem:[%s4 + $0x38] sm:$0xff]
  %v689 = vld [vmem:[%s4 + $0x40] sm:$0xff]
  %v690 = vld [vmem:[%s4 + $0x48] sm:$0xff]
  %v691 = vld [vmem:[%s4 + $0x50] sm:$0xff]
  %v692 = vld [vmem:[%s4 + $0x58] sm:$0xff]
  %v693 = vld [vmem:[%s4 + $0x60] sm:$0xff]
  %v694 = vld [vmem:[%s4 + $0x68] sm:$0xff]
  %v695 = vld [vmem:[%s4 + $0x70] sm:$0xff]
  %v696 = vld [vmem:[%s4 + $0x78] sm:$0xff]
  %v697 = vld [vmem:[%s4 + $0x80] sm:$0xff]
  %v698 = vld [vmem:[%s4 + $0x88] sm:$0xff]
  %v699 = vld [vmem:[%s4 + $0x90] sm:$0xff]
  %v700 = vld [vmem:[%s4 + $0x98] sm:$0xff]
  %v701 = vld [vmem:[%s4 + $0xa0] sm:$0xff]
  %v702 = vld [vmem:[%s4 + $0xa8] sm:$0xff]
  %v703 = vld [vmem:[%s4 + $0xb0] sm:$0xff]
  %v704 = vld [vmem:[%s4 + $0xb8] sm:$0xff]
  %v705 = vld [vmem:[%s4 + $0xc0] sm:$0xff]
  %v706 = vld [vmem:[%s4 + $0xc8] sm:$0xff]
  %v707 = vld [vmem:[%s4 + $0xd0] sm:$0xff]
  %v708 = vld [vmem:[%s4 + $0xd8] sm:$0xff]
  %v709 = vld [vmem:[%s4 + $0xe0] sm:$0xff]
  %v710 = vld [vmem:[%s4 + $0xe8] sm:$0xff]
  %v711 = vld [vmem:[%s4 + $0xf0] sm:$0xff]
  %v712 = vld [vmem:[%s4 + $0xf8] sm:$0xff]
  %v713 = vld [vmem:[%s4 + $0x100] sm:$0xff]
  %v714 = vld [vmem:[%s4 + $0x108] sm:$0xff]
  %v715 = vld [vmem:[%s4 + $0x110] sm:$0xff]
  %v716 = vld [vmem:[%s4 + $0x118] sm:$0xff]
  %v717 = vld [vmem:[%s4 + $0x120] sm:$0xff]
  %v718 = vld [vmem:[%s4 + $0x128] sm:$0xff]
  %v719 = vld [vmem:[%s4 + $0x130] sm:$0xff]
  %v720 = vld [vmem:[%s4 + $0x138] sm:$0xff]
  %v721 = vld [vmem:[%s4 + $0x140] sm:$0xff]
  %v722 = vld [vmem:[%s4 + $0x148] sm:$0xff]
  %v723 = vld [vmem:[%s4 + $0x150] sm:$0xff]
  %v724 = vld [vmem:[%s4 + $0x158] sm:$0xff]
  %v725 = vld [vmem:[%s4 + $0x160] sm:$0xff]
  %v726 = vld [vmem:[%s4 + $0x168] sm:$0xff]
  %v727 = vld [vmem:[%s4 + $0x170] sm:$0xff]
  %v728 = vld [vmem:[%s4 + $0x178] sm:$0xff]
  %729 = vmatprep.subr.mxu0 0.0
  %730 = vmatpush1.msra.mxu0 %v681
  %731 = vmatprep.subr.mxu0 0.0
  %732 = vmatpush1.msra.mxu0 %v682
  %733 = vmatprep.subr.mxu0 0.0
  %734 = vmatpush1.msra.mxu0 %v683
  %735 = vmatprep.subr.mxu0 0.0
  %736 = vmatpush1.msra.mxu0 %v684
  %737 = vmatprep.subr.mxu0 0.0
  %738 = vmatpush1.msra.mxu0 %v685
  %739 = vmatprep.subr.mxu0 0.0
  %740 = vmatpush1.msra.mxu0 %v686
  %741 = vmatprep.subr.mxu0 0.0
  %742 = vmatpush1.msra.mxu0 %v687
  %743 = vmatprep.subr.mxu0 0.0
  %744 = vmatpush1.msra.mxu0 %v688
  %745 = vmatprep.subr.mxu0 0.0
  %746 = vmatpush1.msra.mxu0 %v689
  %747 = vmatprep.subr.mxu0 0.0
  %748 = vmatpush1.msra.mxu0 %v690
  %749 = vmatprep.subr.mxu0 0.0
  %750 = vmatpush1.msra.mxu0 %v691
  %751 = vmatprep.subr.mxu0 0.0
  %752 = vmatpush1.msra.mxu0 %v692
  %753 = vmatprep.subr.mxu0 0.0
  %754 = vmatpush1.msra.mxu0 %v693
  %755 = vmatprep.subr.mxu0 0.0
  %756 = vmatpush1.msra.mxu0 %v694
  %757 = vmatprep.subr.mxu0 0.0
  %758 = vmatpush1.msra.mxu0 %v695
  %759 = vmatprep.subr.mxu0 0.0
  %760 = vmatpush1.msra.mxu0 %v696
  %761 = vmatprep.subr.mxu0 0.0
  %762 = vmatpush1.msra.mxu0 %v697
  %763 = vmatprep.subr.mxu0 0.0
  %764 = vmatpush1.msra.mxu0 %v698
  %765 = vmatprep.subr.mxu0 0.0
  %766 = vmatpush1.msra.mxu0 %v699
  %767 = vmatprep.subr.mxu0 0.0
  %768 = vmatpush1.msra.mxu0 %v700
  %769 = vmatprep.subr.mxu0 0.0
  %770 = vmatpush1.msra.mxu0 %v701
  %771 = vmatprep.subr.mxu0 0.0
  %772 = vmatpush1.msra.mxu0 %v702
  %773 = vmatprep.subr.mxu0 0.0
  %774 = vmatpush1.msra.mxu0 %v703
  %775 = vmatprep.subr.mxu0 0.0
  %776 = vmatpush1.msra.mxu0 %v704
  %777 = vmatprep.subr.mxu0 0.0
  %778 = vmatpush1.msra.mxu0 %v705
  %779 = vmatprep.subr.mxu0 0.0
  %780 = vmatpush1.msra.mxu0 %v706
  %781 = vmatprep.subr.mxu0 0.0
  %782 = vmatpush1.msra.mxu0 %v707
  %783 = vmatprep.subr.mxu0 0.0
  %784 = vmatpush1.msra.mxu0 %v708
  %785 = vmatprep.subr.mxu0 0.0
  %786 = vmatpush1.msra.mxu0 %v709
  %787 = vmatprep.subr.mxu0 0.0
  %788 = vmatpush1.msra.mxu0 %v710
  %789 = vmatprep.subr.mxu0 0.0
  %790 = vmatpush1.msra.mxu0 %v711
  %791 = vmatprep.subr.mxu0 0.0
  %792 = vmatpush1.msra.mxu0 %v712
  %793 = vmatprep.mubr.f32.mxu0 %v653
  %794 = vmatmul.mubr.f32.gmra.mrb[0].mxu0 %v665
  %v795 = vpop.f32.mrb[0].mxu0
  %v796 = vadd.f32 0.0, %v795
  %v797 = vpop.f32.mrb[0].mxu0
  %798 = vmatprep.mubr.f32.mxu0 %v654
  %799 = vmatmul.mubr.f32.gmra.mrb[0].mxu0 %v666
  %v800 = vpop.f32.mrb[0].mxu0
  %v801 = vadd.f32 0.0, %v800
  %v802 = vpop.f32.mrb[0].mxu0
  %803 = vmatprep.mubr.f32.mxu0 %v655
  %804 = vmatmul.mubr.f32.gmra.mrb[0].mxu0 %v667
  %v805 = vpop.f32.mrb[0].mxu0
  %v806 = vadd.f32 0.0, %v805
  %v807 = vpop.f32.mrb[0].mxu0
  %808 = vmatprep.mubr.f32.mxu0 %v656
  %809 = vmatmul.mubr.f32.gmra.mrb[0].mxu0 %v668
  %v810 = vpop.f32.mrb[0].mxu0
  %v811 = vadd.f32 0.0, %v810
  %v812 = vpop.f32.mrb[0].mxu0
  %813 = vdwg.mxu0
  %814 = vmatprep.subr.mxu0 0.0
  %815 = vmatpush1.msra.mxu0 %v713
  %816 = vmatprep.subr.mxu0 0.0
  %817 = vmatpush1.msra.mxu0 %v714
  %818 = vmatprep.subr.mxu0 0.0
  %819 = vmatpush1.msra.mxu0 %v715
  %820 = vmatprep.subr.mxu0 0.0
  %821 = vmatpush1.msra.mxu0 %v716
  %822 = vmatprep.subr.mxu0 0.0
  %823 = vmatpush1.msra.mxu0 %v717
  %824 = vmatprep.subr.mxu0 0.0
  %825 = vmatpush1.msra.mxu0 %v718
  %826 = vmatprep.subr.mxu0 0.0
  %827 = vmatpush1.msra.mxu0 %v719
  %828 = vmatprep.subr.mxu0 0.0
  %829 = vmatpush1.msra.mxu0 %v720
  %830 = vmatprep.subr.mxu0 0.0
  %831 = vmatpush1.msra.mxu0 %v721
  %832 = vmatprep.subr.mxu0 0.0
  %833 = vmatpush1.msra.mxu0 %v722
  %834 = vmatprep.subr.mxu0 0.0
  %835 = vmatpush1.msra.mxu0 %v723
  %836 = vmatprep.subr.mxu0 0.0
  %837 = vmatpush1.msra.mxu0 %v724
  %838 = vmatprep.subr.mxu0 0.0
  %839 = vmatpush1.msra.mxu0 %v725
  %840 = vmatprep.subr.mxu0 0.0
  %841 = vmatpush1.msra.mxu0 %v726
  %842 = vmatprep.subr.mxu0 0.0
  %843 = vmatpush1.msra.mxu0 %v727
  %844 = vmatprep.subr.mxu0 0.0
  %845 = vmatpush1.msra.mxu0 %v728
  %846 = vmatprep.subr.mxu0 0.0
  %847 = vmatpush1.msra.mxu0 0.0
  %848 = vmatprep.subr.mxu0 0.0
  %849 = vmatpush1.msra.mxu0 0.0
  %850 = vmatprep.subr.mxu0 0.0
  %851 = vmatpush1.msra.mxu0 0.0
  %852 = vmatprep.subr.mxu0 0.0
  %853 = vmatpush1.msra.mxu0 0.0
  %854 = vmatprep.subr.mxu0 0.0
  %855 = vmatpush1.msra.mxu0 0.0
  %856 = vmatprep.subr.mxu0 0.0
  %857 = vmatpush1.msra.mxu0 0.0
  %858 = vmatprep.subr.mxu0 0.0
  %859 = vmatpush1.msra.mxu0 0.0
  %860 = vmatprep.subr.mxu0 0.0
  %861 = vmatpush1.msra.mxu0 0.0
  %862 = vmatprep.subr.mxu0 0.0
  %863 = vmatpush1.msra.mxu0 0.0
  %864 = vmatprep.subr.mxu0 0.0
  %865 = vmatpush1.msra.mxu0 0.0
  %866 = vmatprep.subr.mxu0 0.0
  %867 = vmatpush1.msra.mxu0 0.0
  %868 = vmatprep.subr.mxu0 0.0
  %869 = vmatpush1.msra.mxu0 0.0
  %870 = vmatprep.subr.mxu0 0.0
  %871 = vmatpush1.msra.mxu0 0.0
  %872 = vmatprep.subr.mxu0 0.0
  %873 = vmatpush1.msra.mxu0 0.0
  %874 = vmatprep.subr.mxu0 0.0
  %875 = vmatpush1.msra.mxu0 0.0
  %876 = vmatprep.subr.mxu0 0.0
  %877 = vmatpush1.msra.mxu0 0.0
  %878 = vmatprep.mubr.f32.mxu0 0.0
  %879 = vmatmul.mubr.f32.gmra.mrb[0].mxu0 %v677
  %v880 = vpop.f32.mrb[0].mxu0
  %v881 = vadd.f32 %v796, %v880
  %v882 = vpop.f32.mrb[0].mxu0
  %883 = vmatprep.mubr.f32.mxu0 0.0
  %884 = vmatmul.mubr.f32.gmra.mrb[0].mxu0 %v678
  %v885 = vpop.f32.mrb[0].mxu0
  %v886 = vadd.f32 %v801, %v885
  %v887 = vpop.f32.mrb[0].mxu0
  %888 = vmatprep.mubr.f32.mxu0 0.0
  %889 = vmatmul.mubr.f32.gmra.mrb[0].mxu0 %v679
  %v890 = vpop.f32.mrb[0].mxu0
  %v891 = vadd.f32 %v806, %v890
  %v892 = vpop.f32.mrb[0].mxu0
  %893 = vmatprep.mubr.f32.mxu0 0.0
  %894 = vmatmul.mubr.f32.gmra.mrb[0].mxu0 %v680
  %v895 = vpop.f32.mrb[0].mxu0
  %v896 = vadd.f32 %v811, %v895
  %v897 = vpop.f32.mrb[0].mxu0
  %898 = vdwg.mxu0
  %v899 = vadd.f32 %v881, %v886
  %v900 = vadd.f32 %v899, %v891
  %v901 = vadd.f32 %v900, %v896
  %v902 = vrot.slane %v901, 4
  %v903 = vadd.f32 %v901, %v902
  %v904 = vrot.slane %v903, 2
  %v905 = vadd.f32 %v903, %v904
  %v906 = vrot.slane %v905, 1
  %v907 = vadd.f32 %v905, %v906
  %v908 = vmul.f32 %v881, %v881
  %v909 = vmul.f32 %v886, %v886
  %v910 = vmul.f32 %v891, %v891
  %v911 = vmul.f32 %v896, %v896
  %v912 = vadd.f32 %v908, %v909
  %v913 = vadd.f32 %v912, %v910
  %v914 = vadd.f32 %v913, %v911
  %v915 = vrot.slane %v914, 4
  %v916 = vadd.f32 %v914, %v915
  %v917 = vrot.slane %v916, 2
  %v918 = vadd.f32 %v916, %v917
  %v919 = vrot.slane %v918, 1
  %v920 = vadd.f32 %v918, %v919
  %921 = vmatprep.subr.mxu0 0.0
  %922 = vmatpush1.msra.mxu0 %v466
  %923 = vmatprep.subr.mxu0 0.0
  %924 = vmatpush1.msra.mxu0 %v467
  %925 = vmatprep.subr.mxu0 0.0
  %926 = vmatpush1.msra.mxu0 %v468
  %927 = vmatprep.subr.mxu0 0.0
  %928 = vmatpush1.msra.mxu0 %v469
  %929 = vmatprep.subr.mxu0 0.0
  %930 = vmatpush1.msra.mxu0 %v470
  %931 = vmatprep.subr.mxu0 0.0
  %932 = vmatpush1.msra.mxu0 %v471
  %933 = vmatprep.subr.mxu0 0.0
  %934 = vmatpush1.msra.mxu0 %v472
  %935 = vmatprep.subr.mxu0 0.0
  %936 = vmatpush1.msra.mxu0 %v473
  %937 = vmatprep.subr.mxu0 0.0
  %938 = vmatpush1.msra.mxu0 %v474
  %939 = vmatprep.subr.mxu0 0.0
  %940 = vmatpush1.msra.mxu0 %v475
  %941 = vmatprep.subr.mxu0 0.0
  %942 = vmatpush1.msra.mxu0 %v476
  %943 = vmatprep.subr.mxu0 0.0
  %944 = vmatpush1.msra.mxu0 %v477
  %945 = vmatprep.subr.mxu0 0.0
  %946 = vmatpush1.msra.mxu0 %v478
  %947 = vmatprep.subr.mxu0 0.0
  %948 = vmatpush1.msra.mxu0 %v479
  %949 = vmatprep.subr.mxu0 0.0
  %950 = vmatpush1.msra.mxu0 %v480
  %951 = vmatprep.subr.mxu0 0.0
  %952 = vmatpush1.msra.mxu0 %v481
  %953 = vmatprep.subr.mxu0 0.0
  %954 = vmatpush1.msra.mxu0 0.0
  %955 = vmatprep.subr.mxu0 0.0
  %956 = vmatpush1.msra.mxu0 0.0
  %957 = vmatprep.subr.mxu0 0.0
  %958 = vmatpush1.msra.mxu0 0.0
  %959 = vmatprep.subr.mxu0 0.0
  %960 = vmatpush1.msra.mxu0 0.0
  %961 = vmatprep.subr.mxu0 0.0
  %962 = vmatpush1.msra.mxu0 0.0
  %963 = vmatprep.subr.mxu0 0.0
  %964 = vmatpush1.msra.mxu0 0.0
  %965 = vmatprep.subr.mxu0 0.0
  %966 = vmatpush1.msra.mxu0 0.0
  %967 = vmatprep.subr.mxu0 0.0
  %968 = vmatpush1.msra.mxu0 0.0
  %969 = vmatprep.subr.mxu0 0.0
  %970 = vmatpush1.msra.mxu0 0.0
  %971 = vmatprep.subr.mxu0 0.0
  %972 = vmatpush1.msra.mxu0 0.0
  %973 = vmatprep.subr.mxu0 0.0
  %974 = vmatpush1.msra.mxu0 0.0
  %975 = vmatprep.subr.mxu0 0.0
  %976 = vmatpush1.msra.mxu0 0.0
  %977 = vmatprep.subr.mxu0 0.0
  %978 = vmatpush1.msra.mxu0 0.0
  %979 = vmatprep.subr.mxu0 0.0
  %980 = vmatpush1.msra.mxu0 0.0
  %981 = vmatprep.subr.mxu0 0.0
  %982 = vmatpush1.msra.mxu0 0.0
  %983 = vmatprep.subr.mxu0 0.0
  %984 = vmatpush1.msra.mxu0 0.0
  %985 = vmatprep.mubr.f32.mxu0 0.0
  %986 = vmatmul.mubr.f32.gmra.mrb[0].mxu0 %v907
  %v987 = vpop.f32.mrb[0].mxu0
  %v988 = vadd.f32 0.0, %v987
  %v989 = vpop.f32.mrb[0].mxu0
  %990 = vdwg.mxu0
  %v991 = vmul.f32 %v988, 0.001953125
  %992 = vmatprep.subr.mxu0 0.0
  %993 = vmatpush1.msra.mxu0 %v466
  %994 = vmatprep.subr.mxu0 0.0
  %995 = vmatpush1.msra.mxu0 %v467
  %996 = vmatprep.subr.mxu0 0.0
  %997 = vmatpush1.msra.mxu0 %v468
  %998 = vmatprep.subr.mxu0 0.0
  %999 = vmatpush1.msra.mxu0 %v469
  %1000 = vmatprep.subr.mxu0 0.0
  %1001 = vmatpush1.msra.mxu0 %v470
  %1002 = vmatprep.subr.mxu0 0.0
  %1003 = vmatpush1.msra.mxu0 %v471
  %1004 = vmatprep.subr.mxu0 0.0
  %1005 = vmatpush1.msra.mxu0 %v472
  %1006 = vmatprep.subr.mxu0 0.0
  %1007 = vmatpush1.msra.mxu0 %v473
  %1008 = vmatprep.subr.mxu0 0.0
  %1009 = vmatpush1.msra.mxu0 %v474
  %1010 = vmatprep.subr.mxu0 0.0
  %1011 = vmatpush1.msra.mxu0 %v475
  %1012 = vmatprep.subr.mxu0 0.0
  %1013 = vmatpush1.msra.mxu0 %v476
  %1014 = vmatprep.subr.mxu0 0.0
  %1015 = vmatpush1.msra.mxu0 %v477
  %1016 = vmatprep.subr.mxu0 0.0
  %1017 = vmatpush1.msra.mxu0 %v478
  %1018 = vmatprep.subr.mxu0 0.0
  %1019 = vmatpush1.msra.mxu0 %v479
  %1020 = vmatprep.subr.mxu0 0.0
  %1021 = vmatpush1.msra.mxu0 %v480
  %1022 = vmatprep.subr.mxu0 0.0
  %1023 = vmatpush1.msra.mxu0 %v481
  %1024 = vmatprep.subr.mxu0 0.0
  %1025 = vmatpush1.msra.mxu0 0.0
  %1026 = vmatprep.subr.mxu0 0.0
  %1027 = vmatpush1.msra.mxu0 0.0
  %1028 = vmatprep.subr.mxu0 0.0
  %1029 = vmatpush1.msra.mxu0 0.0
  %1030 = vmatprep.subr.mxu0 0.0
  %1031 = vmatpush1.msra.mxu0 0.0
  %1032 = vmatprep.subr.mxu0 0.0
  %1033 = vmatpush1.msra.mxu0 0.0
  %1034 = vmatprep.subr.mxu0 0.0
  %1035 = vmatpush1.msra.mxu0 0.0
  %1036 = vmatprep.subr.mxu0 0.0
  %1037 = vmatpush1.msra.mxu0 0.0
  %1038 = vmatprep.subr.mxu0 0.0
  %1039 = vmatpush1.msra.mxu0 0.0
  %1040 = vmatprep.subr.mxu0 0.0
  %1041 = vmatpush1.msra.mxu0 0.0
  %1042 = vmatprep.subr.mxu0 0.0
  %1043 = vmatpush1.msra.mxu0 0.0
  %1044 = vmatprep.subr.mxu0 0.0
  %1045 = vmatpush1.msra.mxu0 0.0
  %1046 = vmatprep.subr.mxu0 0.0
  %1047 = vmatpush1.msra.mxu0 0.0
  %1048 = vmatprep.subr.mxu0 0.0
  %1049 = vmatpush1.msra.mxu0 0.0
  %1050 = vmatprep.subr.mxu0 0.0
  %1051 = vmatpush1.msra.mxu0 0.0
  %1052 = vmatprep.subr.mxu0 0.0
  %1053 = vmatpush1.msra.mxu0 0.0
  %1054 = vmatprep.subr.mxu0 0.0
  %1055 = vmatpush1.msra.mxu0 0.0
  %1056 = vmatprep.mubr.f32.mxu0 0.0
  %1057 = vmatmul.mubr.f32.gmra.mrb[0].mxu0 %v920
  %v1058 = vpop.f32.mrb[0].mxu0
  %v1059 = vadd.f32 0.0, %v1058
  %v1060 = vpop.f32.mrb[0].mxu0
  %1061 = vdwg.mxu0
  %v1062 = vmul.f32 %v1059, 0.001953125
  %v1063 = vmul.f32 %v991, %v991
  %v1064 = vsub.f32 %v1062, %v1063
  %v1065 = vld [vmem:[%s9] sm:$0x1]
  %v1066 = vadd.f32 %v1064, 1e-05
  %v1067 = vrsqrt.pop %v1066
  %v1068 = vmul.f32 %v1065, %v1067
  %v1069 = vld [vmem:[%s10] sm:$0x1]
  %v1070 = vmul.f32 %v991, %v1068
  %v1071 = vsub.f32 %v1069, %v1070
  %v1073 = vlaneseq
  %v1074 = vshrl.u32 %v1073, 7
  %v1075 = vsub.s32 0, %v1074
  %v1076 = vrot.slane %v1068, %v1075
  %v1078 = vmul.f32 %v881, %v1076
  %v1079 = vmul.f32 %v886, %v1076
  %v1080 = vmul.f32 %v891, %v1076
  %v1081 = vmul.f32 %v896, %v1076
  %v1083 = vlaneseq
  %v1084 = vshrl.u32 %v1083, 7
  %v1085 = vsub.s32 0, %v1084
  %v1086 = vrot.slane %v1071, %v1085
  %v1088 = vadd.f32 %v1078, %v1086
  %v1089 = vadd.f32 %v1079, %v1086
  %v1090 = vadd.f32 %v1080, %v1086
  %v1091 = vadd.f32 %v1081, %v1086
  %v1092 = vld [vmem:[%s5] sm:$0xff]
  %v1093 = vld [vmem:[%s5 + $0x8] sm:$0xff]
  %v1094 = vld [vmem:[%s5 + $0x10] sm:$0xff]
  %v1095 = vld [vmem:[%s5 + $0x18] sm:$0xff]
  %v1096 = vld [vmem:[%s5 + $0x20] sm:$0xff]
  %v1097 = vld [vmem:[%s5 + $0x28] sm:$0xff]
  %v1098 = vld [vmem:[%s5 + $0x30] sm:$0xff]
  %v1099 = vld [vmem:[%s5 + $0x38] sm:$0xff]
  %1100 = vmatprep.subr.mxu0 0.0
  %1101 = vmatpush1.msra.mxu0 %v1092
  %1102 = vmatprep.subr.mxu0 0.0
  %1103 = vmatpush1.msra.mxu0 %v1093
  %1104 = vmatprep.subr.mxu0 0.0
  %1105 = vmatpush1.msra.mxu0 %v1094
  %1106 = vmatprep.subr.mxu0 0.0
  %1107 = vmatpush1.msra.mxu0 %v1095
  %1108 = vmatprep.subr.mxu0 0.0
  %1109 = vmatpush1.msra.mxu0 %v1096
  %1110 = vmatprep.subr.mxu0 0.0
  %1111 = vmatpush1.msra.mxu0 %v1097
  %1112 = vmatprep.subr.mxu0 0.0
  %1113 = vmatpush1.msra.mxu0 %v1098
  %1114 = vmatprep.subr.mxu0 0.0
  %1115 = vmatpush1.msra.mxu0 %v1099
  %1116 = vmatprep.subr.mxu0 0.0
  %1117 = vmatpush1.msra.mxu0 0.0
  %1118 = vmatprep.subr.mxu0 0.0
  %1119 = vmatpush1.msra.mxu0 0.0
  %1120 = vmatprep.subr.mxu0 0.0
  %1121 = vmatpush1.msra.mxu0 0.0
  %1122 = vmatprep.subr.mxu0 0.0
  %1123 = vmatpush1.msra.mxu0 0.0
  %1124 = vmatprep.subr.mxu0 0.0
  %1125 = vmatpush1.msra.mxu0 0.0
  %1126 = vmatprep.subr.mxu0 0.0
  %1127 = vmatpush1.msra.mxu0 0.0
  %1128 = vmatprep.subr.mxu0 0.0
  %1129 = vmatpush1.msra.mxu0 0.0
  %1130 = vmatprep.subr.mxu0 0.0
  %1131 = vmatpush1.msra.mxu0 0.0
  %1132 = vmatprep.subr.mxu0 0.0
  %1133 = vmatpush1.msra.mxu0 0.0
  %1134 = vmatprep.subr.mxu0 0.0
  %1135 = vmatpush1.msra.mxu0 0.0
  %1136 = vmatprep.subr.mxu0 0.0
  %1137 = vmatpush1.msra.mxu0 0.0
  %1138 = vmatprep.subr.mxu0 0.0
  %1139 = vmatpush1.msra.mxu0 0.0
  %1140 = vmatprep.subr.mxu0 0.0
  %1141 = vmatpush1.msra.mxu0 0.0
  %1142 = vmatprep.subr.mxu0 0.0
  %1143 = vmatpush1.msra.mxu0 0.0
  %1144 = vmatprep.subr.mxu0 0.0
  %1145 = vmatpush1.msra.mxu0 0.0
  %1146 = vmatprep.subr.mxu0 0.0
  %1147 = vmatpush1.msra.mxu0 0.0
  %1148 = vmatprep.subr.mxu0 0.0
  %1149 = vmatpush1.msra.mxu0 0.0
  %1150 = vmatprep.subr.mxu0 0.0
  %1151 = vmatpush1.msra.mxu0 0.0
  %1152 = vmatprep.subr.mxu0 0.0
  %1153 = vmatpush1.msra.mxu0 0.0
  %1154 = vmatprep.subr.mxu0 0.0
  %1155 = vmatpush1.msra.mxu0 0.0
  %1156 = vmatprep.subr.mxu0 0.0
  %1157 = vmatpush1.msra.mxu0 0.0
  %1158 = vmatprep.subr.mxu0 0.0
  %1159 = vmatpush1.msra.mxu0 0.0
  %1160 = vmatprep.subr.mxu0 0.0
  %1161 = vmatpush1.msra.mxu0 0.0
  %1162 = vmatprep.subr.mxu0 0.0
  %1163 = vmatpush1.msra.mxu0 0.0
  %1164 = vmatprep.mubr.f32.mxu0 0.0
  %1165 = vmatmul.mubr.f32.gmra.mrb[0].mxu0 %v142
  %v1166 = vpop.f32.mrb[0].mxu0
  %v1167 = vadd.f32 0.0, %v1166
  %v1168 = vpop.f32.mrb[0].mxu0
  %1169 = vmatprep.mubr.f32.mxu0 0.0
  %1170 = vmatmul.mubr.f32.gmra.mrb[0].mxu0 %v145
  %v1171 = vpop.f32.mrb[0].mxu0
  %v1172 = vadd.f32 0.0, %v1171
  %v1173 = vpop.f32.mrb[0].mxu0
  %1174 = vmatprep.mubr.f32.mxu0 0.0
  %1175 = vmatmul.mubr.f32.gmra.mrb[0].mxu0 %v148
  %v1176 = vpop.f32.mrb[0].mxu0
  %v1177 = vadd.f32 0.0, %v1176
  %v1178 = vpop.f32.mrb[0].mxu0
  %1179 = vmatprep.mubr.f32.mxu0 0.0
  %1180 = vmatmul.mubr.f32.gmra.mrb[0].mxu0 %v151
  %v1181 = vpop.f32.mrb[0].mxu0
  %v1182 = vadd.f32 0.0, %v1181
  %v1183 = vpop.f32.mrb[0].mxu0
  %1184 = vdwg.mxu0
  %v1185 = vadd.f32 %v1167, %v1172
  %v1186 = vadd.f32 %v1185, %v1177
  %v1187 = vadd.f32 %v1186, %v1182
  %v1188 = vrot.slane %v1187, 4
  %v1189 = vadd.f32 %v1187, %v1188
  %v1190 = vrot.slane %v1189, 2
  %v1191 = vadd.f32 %v1189, %v1190
  %v1192 = vrot.slane %v1191, 1
  %v1193 = vadd.f32 %v1191, %v1192
  %v1194 = vmul.f32 %v1167, %v1167
  %v1195 = vmul.f32 %v1172, %v1172
  %v1196 = vmul.f32 %v1177, %v1177
  %v1197 = vmul.f32 %v1182, %v1182
  %v1198 = vadd.f32 %v1194, %v1195
  %v1199 = vadd.f32 %v1198, %v1196
  %v1200 = vadd.f32 %v1199, %v1197
  %v1201 = vrot.slane %v1200, 4
  %v1202 = vadd.f32 %v1200, %v1201
  %v1203 = vrot.slane %v1202, 2
  %v1204 = vadd.f32 %v1202, %v1203
  %v1205 = vrot.slane %v1204, 1
  %v1206 = vadd.f32 %v1204, %v1205
  %1207 = vmatprep.subr.mxu0 0.0
  %1208 = vmatpush1.msra.mxu0 %v466
  %1209 = vmatprep.subr.mxu0 0.0
  %1210 = vmatpush1.msra.mxu0 %v467
  %1211 = vmatprep.subr.mxu0 0.0
  %1212 = vmatpush1.msra.mxu0 %v468
  %1213 = vmatprep.subr.mxu0 0.0
  %1214 = vmatpush1.msra.mxu0 %v469
  %1215 = vmatprep.subr.mxu0 0.0
  %1216 = vmatpush1.msra.mxu0 %v470
  %1217 = vmatprep.subr.mxu0 0.0
  %1218 = vmatpush1.msra.mxu0 %v471
  %1219 = vmatprep.subr.mxu0 0.0
  %1220 = vmatpush1.msra.mxu0 %v472
  %1221 = vmatprep.subr.mxu0 0.0
  %1222 = vmatpush1.msra.mxu0 %v473
  %1223 = vmatprep.subr.mxu0 0.0
  %1224 = vmatpush1.msra.mxu0 %v474
  %1225 = vmatprep.subr.mxu0 0.0
  %1226 = vmatpush1.msra.mxu0 %v475
  %1227 = vmatprep.subr.mxu0 0.0
  %1228 = vmatpush1.msra.mxu0 %v476
  %1229 = vmatprep.subr.mxu0 0.0
  %1230 = vmatpush1.msra.mxu0 %v477
  %1231 = vmatprep.subr.mxu0 0.0
  %1232 = vmatpush1.msra.mxu0 %v478
  %1233 = vmatprep.subr.mxu0 0.0
  %1234 = vmatpush1.msra.mxu0 %v479
  %1235 = vmatprep.subr.mxu0 0.0
  %1236 = vmatpush1.msra.mxu0 %v480
  %1237 = vmatprep.subr.mxu0 0.0
  %1238 = vmatpush1.msra.mxu0 %v481
  %1239 = vmatprep.subr.mxu0 0.0
  %1240 = vmatpush1.msra.mxu0 0.0
  %1241 = vmatprep.subr.mxu0 0.0
  %1242 = vmatpush1.msra.mxu0 0.0
  %1243 = vmatprep.subr.mxu0 0.0
  %1244 = vmatpush1.msra.mxu0 0.0
  %1245 = vmatprep.subr.mxu0 0.0
  %1246 = vmatpush1.msra.mxu0 0.0
  %1247 = vmatprep.subr.mxu0 0.0
  %1248 = vmatpush1.msra.mxu0 0.0
  %1249 = vmatprep.subr.mxu0 0.0
  %1250 = vmatpush1.msra.mxu0 0.0
  %1251 = vmatprep.subr.mxu0 0.0
  %1252 = vmatpush1.msra.mxu0 0.0
  %1253 = vmatprep.subr.mxu0 0.0
  %1254 = vmatpush1.msra.mxu0 0.0
  %1255 = vmatprep.subr.mxu0 0.0
  %1256 = vmatpush1.msra.mxu0 0.0
  %1257 = vmatprep.subr.mxu0 0.0
  %1258 = vmatpush1.msra.mxu0 0.0
  %1259 = vmatprep.subr.mxu0 0.0
  %1260 = vmatpush1.msra.mxu0 0.0
  %1261 = vmatprep.subr.mxu0 0.0
  %1262 = vmatpush1.msra.mxu0 0.0
  %1263 = vmatprep.subr.mxu0 0.0
  %1264 = vmatpush1.msra.mxu0 0.0
  %1265 = vmatprep.subr.mxu0 0.0
  %1266 = vmatpush1.msra.mxu0 0.0
  %1267 = vmatprep.subr.mxu0 0.0
  %1268 = vmatpush1.msra.mxu0 0.0
  %1269 = vmatprep.subr.mxu0 0.0
  %1270 = vmatpush1.msra.mxu0 0.0
  %1271 = vmatprep.mubr.f32.mxu0 0.0
  %1272 = vmatmul.mubr.f32.gmra.mrb[0].mxu0 %v1193
  %v1273 = vpop.f32.mrb[0].mxu0
  %v1274 = vadd.f32 0.0, %v1273
  %v1275 = vpop.f32.mrb[0].mxu0
  %1276 = vdwg.mxu0
  %v1277 = vmul.f32 %v1274, 0.001953125
  %1278 = vmatprep.subr.mxu0 0.0
  %1279 = vmatpush1.msra.mxu0 %v466
  %1280 = vmatprep.subr.mxu0 0.0
  %1281 = vmatpush1.msra.mxu0 %v467
  %1282 = vmatprep.subr.mxu0 0.0
  %1283 = vmatpush1.msra.mxu0 %v468
  %1284 = vmatprep.subr.mxu0 0.0
  %1285 = vmatpush1.msra.mxu0 %v469
  %1286 = vmatprep.subr.mxu0 0.0
  %1287 = vmatpush1.msra.mxu0 %v470
  %1288 = vmatprep.subr.mxu0 0.0
  %1289 = vmatpush1.msra.mxu0 %v471
  %1290 = vmatprep.subr.mxu0 0.0
  %1291 = vmatpush1.msra.mxu0 %v472
  %1292 = vmatprep.subr.mxu0 0.0
  %1293 = vmatpush1.msra.mxu0 %v473
  %1294 = vmatprep.subr.mxu0 0.0
  %1295 = vmatpush1.msra.mxu0 %v474
  %1296 = vmatprep.subr.mxu0 0.0
  %1297 = vmatpush1.msra.mxu0 %v475
  %1298 = vmatprep.subr.mxu0 0.0
  %1299 = vmatpush1.msra.mxu0 %v476
  %1300 = vmatprep.subr.mxu0 0.0
  %1301 = vmatpush1.msra.mxu0 %v477
  %1302 = vmatprep.subr.mxu0 0.0
  %1303 = vmatpush1.msra.mxu0 %v478
  %1304 = vmatprep.subr.mxu0 0.0
  %1305 = vmatpush1.msra.mxu0 %v479
  %1306 = vmatprep.subr.mxu0 0.0
  %1307 = vmatpush1.msra.mxu0 %v480
  %1308 = vmatprep.subr.mxu0 0.0
  %1309 = vmatpush1.msra.mxu0 %v481
  %1310 = vmatprep.subr.mxu0 0.0
  %1311 = vmatpush1.msra.mxu0 0.0
  %1312 = vmatprep.subr.mxu0 0.0
  %1313 = vmatpush1.msra.mxu0 0.0
  %1314 = vmatprep.subr.mxu0 0.0
  %1315 = vmatpush1.msra.mxu0 0.0
  %1316 = vmatprep.subr.mxu0 0.0
  %1317 = vmatpush1.msra.mxu0 0.0
  %1318 = vmatprep.subr.mxu0 0.0
  %1319 = vmatpush1.msra.mxu0 0.0
  %1320 = vmatprep.subr.mxu0 0.0
  %1321 = vmatpush1.msra.mxu0 0.0
  %1322 = vmatprep.subr.mxu0 0.0
  %1323 = vmatpush1.msra.mxu0 0.0
  %1324 = vmatprep.subr.mxu0 0.0
  %1325 = vmatpush1.msra.mxu0 0.0
  %1326 = vmatprep.subr.mxu0 0.0
  %1327 = vmatpush1.msra.mxu0 0.0
  %1328 = vmatprep.subr.mxu0 0.0
  %1329 = vmatpush1.msra.mxu0 0.0
  %1330 = vmatprep.subr.mxu0 0.0
  %1331 = vmatpush1.msra.mxu0 0.0
  %1332 = vmatprep.subr.mxu0 0.0
  %1333 = vmatpush1.msra.mxu0 0.0
  %1334 = vmatprep.subr.mxu0 0.0
  %1335 = vmatpush1.msra.mxu0 0.0
  %1336 = vmatprep.subr.mxu0 0.0
  %1337 = vmatpush1.msra.mxu0 0.0
  %1338 = vmatprep.subr.mxu0 0.0
  %1339 = vmatpush1.msra.mxu0 0.0
  %1340 = vmatprep.subr.mxu0 0.0
  %1341 = vmatpush1.msra.mxu0 0.0
  %1342 = vmatprep.mubr.f32.mxu0 0.0
  %1343 = vmatmul.mubr.f32.gmra.mrb[0].mxu0 %v1206
  %v1344 = vpop.f32.mrb[0].mxu0
  %v1345 = vadd.f32 0.0, %v1344
  %v1346 = vpop.f32.mrb[0].mxu0
  %1347 = vdwg.mxu0
  %v1348 = vmul.f32 %v1345, 0.001953125
  %v1349 = vmul.f32 %v1277, %v1277
  %v1350 = vsub.f32 %v1348, %v1349
  %v1351 = vld [vmem:[%s11] sm:$0x1]
  %v1352 = vadd.f32 %v1350, 1e-05
  %v1353 = vrsqrt.pop %v1352
  %v1354 = vmul.f32 %v1351, %v1353
  %v1355 = vld [vmem:[%s12] sm:$0x1]
  %v1356 = vmul.f32 %v1277, %v1354
  %v1357 = vsub.f32 %v1355, %v1356
  %v1359 = vlaneseq
  %v1360 = vshrl.u32 %v1359, 7
  %v1361 = vsub.s32 0, %v1360
  %v1362 = vrot.slane %v1354, %v1361
  %v1364 = vmul.f32 %v1167, %v1362
  %v1365 = vmul.f32 %v1172, %v1362
  %v1366 = vmul.f32 %v1177, %v1362
  %v1367 = vmul.f32 %v1182, %v1362
  %v1369 = vlaneseq
  %v1370 = vshrl.u32 %v1369, 7
  %v1371 = vsub.s32 0, %v1370
  %v1372 = vrot.slane %v1357, %v1371
  %v1374 = vadd.f32 %v1364, %v1372
  %v1375 = vadd.f32 %v1365, %v1372
  %v1376 = vadd.f32 %v1366, %v1372
  %v1377 = vadd.f32 %v1367, %v1372
  %v1378 = vadd.f32 %v1088, %v1374
  %v1379 = vadd.f32 %v1089, %v1375
  %v1380 = vadd.f32 %v1090, %v1376
  %v1381 = vadd.f32 %v1091, %v1377
  %v1382 = vmax.f32 %v1378, 0.0
  %v1383 = vmax.f32 %v1379, 0.0
  %v1384 = vmax.f32 %v1380, 0.0
  %v1385 = vmax.f32 %v1381, 0.0
  %1386 = vst [vmem:[%s13] sm:$0xff] %v1382
  %1387 = vst [vmem:[%s13 + $0x8] sm:$0xff] %v1383
  %1388 = vst [vmem:[%s13 + $0x10] sm:$0xff] %v1384
  %1389 = vst [vmem:[%s13 + $0x18] sm:$0xff] %v1385
  // Predicated region
  $region54: #{residual_block_forward.1} parent=0 // pred_check
    _
  $region55: #{residual_block_forward.1} parent=0 // pred_check_branch
    %1391 = sbr.rel (0) target = $region57
  $region56: #{residual_block_forward.1} parent=0 // pred_region
    _
  $region57: #{residual_block_forward.1} parent=0 // pred_fallthru
    _
  // Predicated region
  $region58: #{residual_block_forward.1} parent=0 // pred_check
    _
  $region59: #{residual_block_forward.1} parent=0 // pred_check_branch
    %1393 = sbr.rel (0) target = $region61
  $region60: #{residual_block_forward.1} parent=0 // pred_region
    _
  $region61: #{residual_block_forward.1} parent=0 // pred_fallthru
    _

</llo_original>
